<compile_context>
chip_gen: v6e
topology: v6e:2x2x1
jax: 0.10.0
libtpu: 0.0.40
codegen_flags: <defaults>
</compile_context>

<pallas_src>
import functools

import jax
import jax.numpy as jnp
from jax.experimental import pallas as pl
from jax.experimental.pallas import tpu as pltpu


_LANE = 128
_SUBLANE = 8
_NEG_LARGE = -1e30  # stand-in for -inf in the masked log_softmax (avoids inf-inf NaNs)


# ---------------------------------------------------------------------------
# Small helpers
# ---------------------------------------------------------------------------

def _round_up(x, m):
    return ((x + m - 1) // m) * m


def _pad2d(a, rows, cols):
    pr, pc = rows - a.shape[0], cols - a.shape[1]
    if pr == 0 and pc == 0:
        return a
    return jnp.pad(a, ((0, pr), (0, pc)))


def _vmem_budget_bytes():
    """~75% of this generation's VMEM (v5e/v6e: 128 MiB, v7x: 64 MiB)."""
    try:
        cap = int(pltpu.get_tpu_info().vmem_capacity_bytes)
    except Exception:
        cap = 64 << 20  # conservative fallback (v7x per-core VMEM)
    return (cap * 3) // 4


# ---------------------------------------------------------------------------
# Kernels
# ---------------------------------------------------------------------------

def _fused_forward_kernel(adj_ref, x_ref, w1_ref, b1_ref, w2_ref, b2_ref,
                          o_ref, *, n_class):
    """Small-graph fast path: whole 2-layer GCN + log_softmax in one grid step.

    adj arrives in f32 and is cast to bf16 in-kernel; all matmuls are bf16 MXU
    operands with f32 accumulation; bias / ReLU / log_softmax stay in f32.
    """
    adj = adj_ref[...].astype(jnp.bfloat16)
    xw = jnp.dot(x_ref[...], w1_ref[...], preferred_element_type=jnp.float32)
    h = jnp.maximum(
        jnp.dot(adj, xw.astype(jnp.bfloat16), preferred_element_type=jnp.float32)
        + b1_ref[...],
        0.0,
    )
    hw = jnp.dot(h.astype(jnp.bfloat16), w2_ref[...],
                 preferred_element_type=jnp.float32)
    z = (jnp.dot(adj, hw.astype(jnp.bfloat16), preferred_element_type=jnp.float32)
         + b2_ref[...])
    # Mask lane-padding columns before the softmax statistics.
    col = jax.lax.broadcasted_iota(jnp.int32, z.shape, 1)
    z = jnp.where(col < n_class, z, _NEG_LARGE)
    z_max = jnp.max(z, axis=-1, keepdims=True)
    zs = z - z_max
    lse = jnp.log(jnp.sum(jnp.exp(zs), axis=-1, keepdims=True))
    o_ref[...] = (zs - lse).astype(o_ref.dtype)


def _gcn_layer_kernel(adj_ref, x_ref, w_ref, b_ref, o_ref, acc_ref,
                      *, activation, n_valid):
    """One fused GCN layer, per (row tile, contraction tile) grid step.

    acc += adj_tile(bf16) @ (x_tile @ W)(bf16)   with f32 accumulation;
    epilogue (bias + ReLU / masked log_softmax) runs on the last contraction
    step.  adj is streamed in f32 and cast to bf16 in-kernel.
    """
    k = pl.program_id(1)

    @pl.when(k == 0)
    def _():
        acc_ref[...] = jnp.zeros_like(acc_ref)

    y = jnp.dot(x_ref[...], w_ref[...], preferred_element_type=jnp.float32)
    adj_bf = adj_ref[...].astype(jnp.bfloat16)
    acc_ref[...] += jnp.dot(adj_bf, y.astype(jnp.bfloat16),
                            preferred_element_type=jnp.float32)

    @pl.when(k == pl.num_programs(1) - 1)
    def _():
        z = acc_ref[...] + b_ref[...]
        if activation == "relu":
            o_ref[...] = jnp.maximum(z, 0.0).astype(o_ref.dtype)
        else:  # masked log_softmax over the first n_valid (lane-dense padded) columns
            col = jax.lax.broadcasted_iota(jnp.int32, z.shape, 1)
            z = jnp.where(col < n_valid, z, _NEG_LARGE)
            z_max = jnp.max(z, axis=-1, keepdims=True)
            zs = z - z_max
            lse = jnp.log(jnp.sum(jnp.exp(zs), axis=-1, keepdims=True))
            o_ref[...] = (zs - lse).astype(o_ref.dtype)


# ---------------------------------------------------------------------------
# pallas_call wrappers
# ---------------------------------------------------------------------------

def _fused_forward(adj, x_bf, w1p, b1p, w2p, b2p, n_class, vmem_limit):
    n = adj.shape[0]
    cp = w2p.shape[1]
    kernel = functools.partial(_fused_forward_kernel, n_class=n_class)
    return pl.pallas_call(
        kernel,
        out_shape=jax.ShapeDtypeStruct((n, cp), jnp.float32),
        grid=(1,),
        in_specs=[
            pl.BlockSpec(adj.shape, lambda i: (0, 0)),
            pl.BlockSpec(x_bf.shape, lambda i: (0, 0)),
            pl.BlockSpec(w1p.shape, lambda i: (0, 0)),
            pl.BlockSpec(b1p.shape, lambda i: (0, 0)),
            pl.BlockSpec(w2p.shape, lambda i: (0, 0)),
            pl.BlockSpec(b2p.shape, lambda i: (0, 0)),
        ],
        out_specs=pl.BlockSpec((n, cp), lambda i: (0, 0)),
        compiler_params=pltpu.CompilerParams(
            dimension_semantics=("arbitrary",),
            vmem_limit_bytes=int(vmem_limit),
        ),
    )(adj, x_bf, w1p, b1p, w2p, b2p)


def _gcn_layer(adj, x, w, b, tm, tk, activation, n_valid, out_dtype, vmem_limit):
    n = adj.shape[0]
    f = x.shape[1]
    kp = w.shape[1]
    kernel = functools.partial(_gcn_layer_kernel,
                               activation=activation, n_valid=n_valid)
    return pl.pallas_call(
        kernel,
        out_shape=jax.ShapeDtypeStruct((n, kp), out_dtype),
        grid=(n // tm, n // tk),
        in_specs=[
            pl.BlockSpec((tm, tk), lambda i, k: (i, k)),  # adj tile (f32, cast in-kernel)
            pl.BlockSpec((tk, f), lambda i, k: (k, 0)),   # feature tile (bf16)
            pl.BlockSpec((f, kp), lambda i, k: (0, 0)),   # W (bf16, resident)
            pl.BlockSpec((1, kp), lambda i, k: (0, 0)),   # bias (f32)
        ],
        out_specs=pl.BlockSpec((tm, kp), lambda i, k: (i, 0)),
        scratch_shapes=[pltpu.VMEM((tm, kp), jnp.float32)],
        compiler_params=pltpu.CompilerParams(
            dimension_semantics=("parallel", "arbitrary"),
            vmem_limit_bytes=int(vmem_limit),
        ),
    )(adj, x, w, b)


# ---------------------------------------------------------------------------
# VMEM-aware sizing
# ---------------------------------------------------------------------------

def _layer_vmem_bytes(tm, tk, f, kp, out_bytes):
    return (2 * tm * tk * 4          # adj f32 tile, double-buffered
            + tm * tk * 2            # in-kernel bf16 copy of the adj tile
            + 2 * tk * f * 2         # x tile (bf16), double-buffered
            + tk * kp * (4 + 2)      # x@W partial (f32 + bf16 cast)
            + 2 * f * kp * 2         # W (bf16)
            + 2 * tm * kp * out_bytes  # output tile, double-buffered
            + tm * kp * 4            # f32 accumulator scratch
            + (2 << 20))             # headroom for compiler scratch


def _single_call_vmem_bytes(n, f, hp, cp):
    return (n * n * (4 + 2)          # adj f32 + in-kernel bf16 copy
            + n * f * 2              # x (bf16)
            + f * hp * 2 + hp * cp * 2  # weights (bf16)
            + n * hp * (4 + 2 + 4 + 2)  # xw f32/bf16, h f32/bf16
            + n * cp * (4 + 4 + 4)      # hw/z/out
            + (2 << 20))


def _pick_tiles(n, f, kp, budget):
    """Largest (row tile, contraction tile) that fits the VMEM budget."""
    tms = [t for t in (1024, 512, 256, 128, 64, 32, 16, 8) if n % t == 0] or [n]
    tks = [t for t in (4096, 2048, 1024, 512, 256, 128) if n % t == 0] or [n]
    pairs = sorted(((tm, tk) for tm in tms for tk in tks),
                   key=lambda p: (p[0] * p[1], p[1]), reverse=True)
    for tm, tk in pairs:
        if _layer_vmem_bytes(tm, tk, f, kp, 4) <= budget:
            return tm, tk
    # TODO(synk): very large N not divisible by 128 falls back to full blocks
    #             and may exceed VMEM; pad adj/x to a tileable N instead.
    return tms[-1], tks[-1]


# ---------------------------------------------------------------------------
# Forward (mirrors GraphClf.forward, graph_learn=False, eval mode)
# ---------------------------------------------------------------------------

def graph_clf_forward(node_features, init_adj, params, *, force_tiled=False,
                      row_tile=None, col_tile=None):
    """Returns (log_probs [N, C] float32, adj [N, N])."""
    w1, b1, w2, b2 = params["w1"], params["b1"], params["w2"], params["b2"]
    n, f = node_features.shape
    h_dim = w1.shape[1]
    c_dim = w2.shape[1]
    hp = _round_up(max(h_dim, 1), _LANE)
    cp = _round_up(max(c_dim, 1), _LANE)

    # F.dropout(node_features/adj, p, training=False) -> identity
    # learn_graph with graph_learn=False            -> adj = init_adj
    adj = init_adj  # streamed in f32; bf16 cast happens inside the kernels

    # Lane-dense padding of the small per-node dims (H, C) to 128.  Padded W1
    # columns / b1 entries are zero (so padded h columns are exactly 0) and
    # padded W2 rows are zero; padded class columns are masked to -inf in the
    # log_softmax kernel and sliced off below.
    x_bf = node_features.astype(jnp.bfloat16)
    w1p = _pad2d(w1, f, hp).astype(jnp.bfloat16)
    b1p = _pad2d(b1.reshape(1, -1).astype(jnp.float32), 1, hp)
    w2p = _pad2d(w2, hp, cp).astype(jnp.bfloat16)
    b2p = _pad2d(b2.reshape(1, -1).astype(jnp.float32), 1, cp)

    budget = _vmem_budget_bytes()

    if not force_tiled and 2 * _single_call_vmem_bytes(n, f, hp, cp) <= budget:
        # Small-graph fast path: whole forward in ONE pallas_call / grid step.
        log_probs_p = _fused_forward(adj, x_bf, w1p, b1p, w2p, b2p, c_dim, budget)
    else:
        # General path: one fused pallas_call per GCN layer; adj streamed in
        # (tm, tk) f32 tiles with an f32 accumulator over the contraction axis.
        if row_tile is None or col_tile is None:
            tm, tk = _pick_tiles(n, max(f, hp), max(hp, cp), budget)
        else:
            tm, tk = row_tile, col_tile
        assert n % tm == 0 and n % tk == 0, (tm, tk, n)
        assert (tm % _SUBLANE == 0 or tm == n) and (tk % _LANE == 0 or tk == n)

        h = _gcn_layer(adj, x_bf, w1p, b1p, tm, tk, "relu", h_dim,
                       jnp.bfloat16, budget)                       # [N, Hp]
        log_probs_p = _gcn_layer(adj, h, w2p, b2p, tm, tk, "log_softmax",
                                 c_dim, jnp.float32, budget)        # [N, Cp]

    log_probs = log_probs_p[:, :c_dim]
    return log_probs, adj


# ---------------------------------------------------------------------------
# Reference (mirrors the kernel's bf16 casts, f32 accumulation)
# ---------------------------------------------------------------------------

def _reference_forward(node_features, adj, params):
    hi = jax.lax.Precision.HIGHEST
    f32 = lambda a: a.astype(jnp.float32)
    x_bf = node_features.astype(jnp.bfloat16)
    adj_bf = adj.astype(jnp.bfloat16)
    w1_bf = params["w1"].astype(jnp.bfloat16)
    w2_bf = params["w2"].astype(jnp.bfloat16)

    xw = jnp.dot(f32(x_bf), f32(w1_bf), precision=hi).astype(jnp.bfloat16)
    h = jnp.maximum(jnp.dot(f32(adj_bf), f32(xw), precision=hi) + params["b1"], 0.0)
    h = h.astype(jnp.bfloat16)
    hw = jnp.dot(f32(h), f32(w2_bf), precision=hi).astype(jnp.bfloat16)
    z = jnp.dot(f32(adj_bf), f32(hw), precision=hi) + params["b2"]
    return jax.nn.log_softmax(z, axis=-1)


# ---------------------------------------------------------------------------
# Deterministic example inputs
# ---------------------------------------------------------------------------

def make_params(key, n_feat, hidden, n_class):
    """Glorot-uniform-ish init matching nn.Linear shapes."""
    k1, k2 = jax.random.split(key, 2)

    def glorot(k, fan_in, fan_out):
        lim = jnp.sqrt(6.0 / (fan_in + fan_out))
        return jax.random.uniform(k, (fan_in, fan_out), jnp.float32, -lim, lim)

    return {
        "w1": glorot(k1, n_feat, hidden),
        "b1": jnp.zeros((1, hidden), jnp.float32),
        "w2": glorot(k2, hidden, n_class),
        "b2": jnp.zeros((1, n_class), jnp.float32),
    }


def make_init_adj(key, n_nodes):
    """Deterministic symmetric, row-normalized dense adjacency with self-loops."""
    a = jax.random.uniform(key, (n_nodes, n_nodes), jnp.float32)
    a = (a > 0.8).astype(jnp.float32)
    a = jnp.maximum(a, a.T) + jnp.eye(n_nodes, dtype=jnp.float32)
    row_sum = jnp.clip(jnp.sum(a, axis=-1, keepdims=True), 1e-12)
    return a / row_sum


if __name__ == "__main__":
    # Small, module-consistent config: num_nodes=256, num_feat=64,
    # hidden_size=64, num_class=8, graph_learn=False, eval mode.
    N, F, H, C = 256, 64, 64, 8

    key = jax.random.PRNGKey(0)
    k_x, k_a, k_p = jax.random.split(key, 3)

    node_features = jax.random.normal(k_x, (N, F), jnp.float32)
    init_adj = make_init_adj(k_a, N)
    params = make_params(k_p, F, H, C)

    # Fast path: whole forward fused into a single pallas_call.
    log_probs, adj_out = graph_clf_forward(node_features, init_adj, params)

    # Also exercise the general tiled path (row tiles x contraction tiles).
    log_probs_tiled, _ = graph_clf_forward(
        node_features, init_adj, params,
        force_tiled=True, row_tile=128, col_tile=128)

    jax.block_until_ready((log_probs, log_probs_tiled, adj_out))

    # Sanity: shapes, log_softmax rows sum to 1 in prob space, matches reference.
    ref = _reference_forward(node_features, init_adj, params)
    prob_row_sums = jnp.sum(jnp.exp(log_probs), axis=-1)

    assert log_probs.shape == (N, C)
    assert log_probs_tiled.shape == (N, C)
    assert adj_out.shape == (N, N)
    assert bool(jnp.all(jnp.abs(prob_row_sums - 1.0) < 1e-4))
    assert bool(jnp.max(jnp.abs(log_probs - ref)) < 5e-2)
    assert bool(jnp.max(jnp.abs(log_probs_tiled - ref)) < 5e-2)

    print("KERNEL_OK")
</pallas_src>

<mosaic_0001>
module attributes {stable_mosaic.version = 11 : i64} {
  func.func @_fused_forward_kernel(%arg0: i32, %arg1: memref<256x256xf32, #tpu.memory_space<vmem>>, %arg2: memref<256x64xbf16, #tpu.memory_space<vmem>>, %arg3: memref<64x128xbf16, #tpu.memory_space<vmem>>, %arg4: memref<1x128xf32, #tpu.memory_space<vmem>>, %arg5: memref<128x128xbf16, #tpu.memory_space<vmem>>, %arg6: memref<1x128xf32, #tpu.memory_space<vmem>>, %arg7: memref<256x128xf32, #tpu.memory_space<vmem>>) attributes {dimension_semantics = [#tpu.dimension_semantics<arbitrary>], iteration_bounds = array<i64: 1>, scalar_prefetch = 0 : i64, scratch_operands = 0 : i64, tpu.core_type = #tpu.core_type<tc>, window_params = [{pipeline_mode = #tpu.pipeline_mode<synchronous>, transform_indices = @transform_0, window_bounds = array<i64: 256, 256>}, {pipeline_mode = #tpu.pipeline_mode<synchronous>, transform_indices = @transform_1, window_bounds = array<i64: 256, 64>}, {pipeline_mode = #tpu.pipeline_mode<synchronous>, transform_indices = @transform_2, window_bounds = array<i64: 64, 128>}, {pipeline_mode = #tpu.pipeline_mode<synchronous>, transform_indices = @transform_3, window_bounds = array<i64: 1, 128>}, {pipeline_mode = #tpu.pipeline_mode<synchronous>, transform_indices = @transform_4, window_bounds = array<i64: 128, 128>}, {pipeline_mode = #tpu.pipeline_mode<synchronous>, transform_indices = @transform_5, window_bounds = array<i64: 1, 128>}, {pipeline_mode = #tpu.pipeline_mode<synchronous>, transform_indices = @transform_6, window_bounds = array<i64: 256, 128>}]} {
    %c0 = arith.constant 0 : index
    %c0_0 = arith.constant 0 : index
    %0 = vector.load %arg1[%c0, %c0_0] : memref<256x256xf32, #tpu.memory_space<vmem>>, vector<256x256xf32>
    %1 = arith.truncf %0 : vector<256x256xf32> to vector<256x256xbf16>
    %c0_1 = arith.constant 0 : index
    %c0_2 = arith.constant 0 : index
    %2 = vector.load %arg2[%c0_1, %c0_2] : memref<256x64xbf16, #tpu.memory_space<vmem>>, vector<256x64xbf16>
    %c0_3 = arith.constant 0 : index
    %c0_4 = arith.constant 0 : index
    %3 = vector.load %arg3[%c0_3, %c0_4] : memref<64x128xbf16, #tpu.memory_space<vmem>>, vector<64x128xbf16>
    %cst = arith.constant dense<0.000000e+00> : vector<256x128xf32>
    %4 = tpu.matmul %2, %3, %cst {dimension_numbers = #tpu.dot_dimension_numbers<[1], [0], [0], [1], [0, 0, 1, 1], [], []>} : vector<256x64xbf16>, vector<64x128xbf16>, vector<256x128xf32> -> vector<256x128xf32>
    %5 = arith.truncf %4 : vector<256x128xf32> to vector<256x128xbf16>
    %cst_5 = arith.constant dense<0.000000e+00> : vector<256x128xf32>
    %6 = tpu.matmul %1, %5, %cst_5 {dimension_numbers = #tpu.dot_dimension_numbers<[1], [0], [0], [1], [0, 0, 1, 1], [], []>} : vector<256x256xbf16>, vector<256x128xbf16>, vector<256x128xf32> -> vector<256x128xf32>
    %c0_6 = arith.constant 0 : index
    %c0_7 = arith.constant 0 : index
    %7 = vector.load %arg4[%c0_6, %c0_7] : memref<1x128xf32, #tpu.memory_space<vmem>>, vector<1x128xf32>
    %8 = vector.broadcast %7 : vector<1x128xf32> to vector<256x128xf32>
    %9 = arith.addf %6, %8 : vector<256x128xf32>
    %cst_8 = arith.constant 0.000000e+00 : f32
    %10 = vector.broadcast %cst_8 : f32 to vector<256x128xf32>
    %11 = arith.maximumf %9, %10 : vector<256x128xf32>
    %12 = arith.truncf %11 : vector<256x128xf32> to vector<256x128xbf16>
    %c0_9 = arith.constant 0 : index
    %c0_10 = arith.constant 0 : index
    %13 = vector.load %arg5[%c0_9, %c0_10] : memref<128x128xbf16, #tpu.memory_space<vmem>>, vector<128x128xbf16>
    %cst_11 = arith.constant dense<0.000000e+00> : vector<256x128xf32>
    %14 = tpu.matmul %12, %13, %cst_11 {dimension_numbers = #tpu.dot_dimension_numbers<[1], [0], [0], [1], [0, 0, 1, 1], [], []>} : vector<256x128xbf16>, vector<128x128xbf16>, vector<256x128xf32> -> vector<256x128xf32>
    %15 = arith.truncf %14 : vector<256x128xf32> to vector<256x128xbf16>
    %cst_12 = arith.constant dense<0.000000e+00> : vector<256x128xf32>
    %16 = tpu.matmul %1, %15, %cst_12 {dimension_numbers = #tpu.dot_dimension_numbers<[1], [0], [0], [1], [0, 0, 1, 1], [], []>} : vector<256x256xbf16>, vector<256x128xbf16>, vector<256x128xf32> -> vector<256x128xf32>
    %c0_13 = arith.constant 0 : index
    %c0_14 = arith.constant 0 : index
    %17 = vector.load %arg6[%c0_13, %c0_14] : memref<1x128xf32, #tpu.memory_space<vmem>>, vector<1x128xf32>
    %18 = vector.broadcast %17 : vector<1x128xf32> to vector<256x128xf32>
    %19 = arith.addf %16, %18 : vector<256x128xf32>
    %20 = tpu.iota {dimensions = array<i32: 1>} : vector<256x128xi32>
    %c8_i32 = arith.constant 8 : i32
    %21 = vector.broadcast %c8_i32 : i32 to vector<256x128xi32>
    %22 = arith.cmpi slt, %20, %21 : vector<256x128xi32>
    %cst_15 = arith.constant -1.000000e+30 : f32
    %23 = vector.broadcast %cst_15 : f32 to vector<256x128xf32>
    %24 = arith.select %22, %19, %23 : vector<256x128xi1>, vector<256x128xf32>
    %cst_16 = arith.constant dense<0xFF800000> : vector<256xf32>
    %25 = vector.multi_reduction <maximumf>, %24, %cst_16 [1] : vector<256x128xf32> to vector<256xf32>
    %26 = vector.shape_cast %25 : vector<256xf32> to vector<256x1xf32>
    %27 = vector.broadcast %26 : vector<256x1xf32> to vector<256x128xf32>
    %28 = arith.subf %24, %27 : vector<256x128xf32>
    %29 = math.exp %28 : vector<256x128xf32>
    %cst_17 = arith.constant dense<0.000000e+00> : vector<256xf32>
    %30 = vector.multi_reduction <add>, %29, %cst_17 [1] : vector<256x128xf32> to vector<256xf32>
    %31 = vector.shape_cast %30 : vector<256xf32> to vector<256x1xf32>
    %32 = math.log %31 : vector<256x1xf32>
    %33 = vector.broadcast %32 : vector<256x1xf32> to vector<256x128xf32>
    %34 = arith.subf %28, %33 : vector<256x128xf32>
    %c0_18 = arith.constant 0 : index
    %c0_19 = arith.constant 0 : index
    %35 = vector.load %arg7[%c0_18, %c0_19] : memref<256x128xf32, #tpu.memory_space<vmem>>, vector<256x128xf32>
    tpu.vector_store %arg7[%c0_18, %c0_19], %34 {strides = array<i32>} : memref<256x128xf32, #tpu.memory_space<vmem>>, vector<256x128xf32>,
    return
  }
  func.func @transform_0(%arg0: i32) -> (i32, i32) {
    %c0_i32 = arith.constant 0 : i32
    %c0_i32_0 = arith.constant 0 : i32
    %c0_i32_1 = arith.constant 0 : i32
    return %c0_i32, %c0_i32_0 : i32, i32
  }
  func.func @transform_1(%arg0: i32) -> (i32, i32) {
    %c0_i32 = arith.constant 0 : i32
    %c0_i32_0 = arith.constant 0 : i32
    %c0_i32_1 = arith.constant 0 : i32
    return %c0_i32, %c0_i32_0 : i32, i32
  }
  func.func @transform_2(%arg0: i32) -> (i32, i32) {
    %c0_i32 = arith.constant 0 : i32
    %c0_i32_0 = arith.constant 0 : i32
    %c0_i32_1 = arith.constant 0 : i32
    return %c0_i32, %c0_i32_0 : i32, i32
  }
  func.func @transform_3(%arg0: i32) -> (i32, i32) {
    %c0_i32 = arith.constant 0 : i32
    %c0_i32_0 = arith.constant 0 : i32
    %c0_i32_1 = arith.constant 0 : i32
    return %c0_i32, %c0_i32_0 : i32, i32
  }
  func.func @transform_4(%arg0: i32) -> (i32, i32) {
    %c0_i32 = arith.constant 0 : i32
    %c0_i32_0 = arith.constant 0 : i32
    %c0_i32_1 = arith.constant 0 : i32
    return %c0_i32, %c0_i32_0 : i32, i32
  }
  func.func @transform_5(%arg0: i32) -> (i32, i32) {
    %c0_i32 = arith.constant 0 : i32
    %c0_i32_0 = arith.constant 0 : i32
    %c0_i32_1 = arith.constant 0 : i32
    return %c0_i32, %c0_i32_0 : i32, i32
  }
  func.func @transform_6(%arg0: i32) -> (i32, i32) {
    %c0_i32 = arith.constant 0 : i32
    %c0_i32_0 = arith.constant 0 : i32
    %c0_i32_1 = arith.constant 0 : i32
    return %c0_i32, %c0_i32_0 : i32, i32
  }
}

</mosaic_0001>

<llo_original>
// kernel: tpu_custom_call.1
$region0: #{tpu_custom_call.1}
  #allocation0 [shape = 'u32[]', space=smem, size = 0x4, offset = 0x4, fixed_abs, tag = 'smem constant byte address 0x4 - core index']
  #allocation1 [shape = 'u32[144,128]{1,0:T(1,128)}', space=vmem, size = 0x12000, scoped, tag = 'internal scratch']
  %s0 = inlined_call_operand.hbm [shape: f32[256,256], index: 0, kind: input, shape index: {}]
  %s1 = inlined_call_operand.vmem [shape: bf16[256,64], index: 1, kind: input, shape index: {}]
  %s2 = inlined_call_operand.vmem [shape: bf16[64,128], index: 2, kind: input, shape index: {}]
  %s3 = inlined_call_operand.vmem [shape: f32[1,128], index: 3, kind: input, shape index: {}]
  %s4 = inlined_call_operand.vmem [shape: bf16[128,128], index: 4, kind: input, shape index: {}]
  %s5 = inlined_call_operand.vmem [shape: f32[1,128], index: 5, kind: input, shape index: {}]
  %s6 = inlined_call_operand.hbm [shape: f32[256,128], index: 6, kind: output, shape index: {}]
  %s7 = sld [smem:[#allocation0]]
  $region38: #{tpu_custom_call.1} parent=0
    _
  %s9 = ssub.s32 1, %s7
  %s10 = scalar_select 0, %s9, %s7
  $region1: #{tpu_custom_call.1} parent=0
    #allocation2 [shape = 'u8[262144]{0}', space=vmem, size = 0x40000, scoped, tag = 'input window, operand 0, single buffered']
    #allocation3 [shape = 's32[1]{0}', space=sflag, size = 0x4, scoped, tag = 'scoped memory for tpu_custom_call.1']
    #allocation4 [shape = 's32[1]{0}', space=sflag, size = 0x4, scoped, tag = 'scoped memory for tpu_custom_call.1']
    #allocation5 [shape = 'u8[131072]{0}', space=vmem, size = 0x20000, scoped, tag = 'output window, operand 0, single buffered']
    %11 = vsyncpa [#allocation3], 0
    %12 = vsyncpa [#allocation4], 0
    // Predicated region
    $region2: #{tpu_custom_call.1} parent=1 // pred_check
      _
    $region3: #{tpu_custom_call.1} parent=1 // pred_check_branch
      %14 = sbr.rel (0) target = $region5
    $region4: #{tpu_custom_call.1} parent=1 // pred_region
      %s16 = ssub.s32 8192, 8192
      %17 = vsyncadd [#allocation3], %s16
      %s18 = sshll.u32 [#allocation2], 4
      %s19 = int_to_ptr.vmem [resolvable:$true] %s18
      %24 = dma.hbm_to_vmem [thread:$0]  %s0, 8192, %s19, [#allocation3], 256, 256, 16
    $region5: #{tpu_custom_call.1} parent=1 // pred_fallthru
      _
    // Predicated region
    $region6: #{tpu_custom_call.1} parent=1 // pred_check
      _
    $region7: #{tpu_custom_call.1} parent=1 // pred_check_branch
      %26 = sbr.rel (0) target = $region9
    $region8: #{tpu_custom_call.1} parent=1 // pred_region
      _
    $region9: #{tpu_custom_call.1} parent=1 // pred_fallthru
      _
    // Predicated region
    $region10: #{tpu_custom_call.1} parent=1 // pred_check
      _
    $region11: #{tpu_custom_call.1} parent=1 // pred_check_branch
      %28 = sbr.rel (0) target = $region13
    $region12: #{tpu_custom_call.1} parent=1 // pred_region
      _
    $region13: #{tpu_custom_call.1} parent=1 // pred_fallthru
      _
    // Predicated region
    $region14: #{tpu_custom_call.1} parent=1 // pred_check
      _
    $region15: #{tpu_custom_call.1} parent=1 // pred_check_branch
      %30 = sbr.rel (0) target = $region17
    $region16: #{tpu_custom_call.1} parent=1 // pred_region
      _
    $region17: #{tpu_custom_call.1} parent=1 // pred_fallthru
      _
    // Predicated region
    $region18: #{tpu_custom_call.1} parent=1 // pred_check
      _
    $region19: #{tpu_custom_call.1} parent=1 // pred_check_branch
      %32 = sbr.rel (0) target = $region21
    $region20: #{tpu_custom_call.1} parent=1 // pred_region
      _
    $region21: #{tpu_custom_call.1} parent=1 // pred_fallthru
      _
    // Predicated region
    $region22: #{tpu_custom_call.1} parent=1 // pred_check
      _
    $region23: #{tpu_custom_call.1} parent=1 // pred_check_branch
      %34 = sbr.rel (0) target = $region25
    $region24: #{tpu_custom_call.1} parent=1 // pred_region
      _
    $region25: #{tpu_custom_call.1} parent=1 // pred_fallthru
      _
    // Predicated region
    $region26: #{tpu_custom_call.1} parent=1 // pred_check
      _
    $region27: #{tpu_custom_call.1} parent=1 // pred_check_branch
      %36 = sbr.rel (0) target = $region29
    $region28: #{tpu_custom_call.1} parent=1 // pred_region
      %37 = dma.done [#allocation3], 8192
    $region29: #{tpu_custom_call.1} parent=1 // pred_fallthru
      _
    %v39 = vld [vmem:[#allocation2] sm:$0xff]
    %v40 = vld [vmem:[#allocation2 + $0x8] sm:$0xff]
    %v41 = vld [vmem:[#allocation2 + $0x10] sm:$0xff]
    %v42 = vld [vmem:[#allocation2 + $0x18] sm:$0xff]
    %v43 = vld [vmem:[#allocation2 + $0x20] sm:$0xff]
    %v44 = vld [vmem:[#allocation2 + $0x28] sm:$0xff]
    %v45 = vld [vmem:[#allocation2 + $0x30] sm:$0xff]
    %v46 = vld [vmem:[#allocation2 + $0x38] sm:$0xff]
    %v47 = vld [vmem:[#allocation2 + $0x40] sm:$0xff]
    %v48 = vld [vmem:[#allocation2 + $0x48] sm:$0xff]
    %v49 = vld [vmem:[#allocation2 + $0x50] sm:$0xff]
    %v50 = vld [vmem:[#allocation2 + $0x58] sm:$0xff]
    %v51 = vld [vmem:[#allocation2 + $0x60] sm:$0xff]
    %v52 = vld [vmem:[#allocation2 + $0x68] sm:$0xff]
    %v53 = vld [vmem:[#allocation2 + $0x70] sm:$0xff]
    %v54 = vld [vmem:[#allocation2 + $0x78] sm:$0xff]
    %v55 = vld [vmem:[#allocation2 + $0x80] sm:$0xff]
    %v56 = vld [vmem:[#allocation2 + $0x88] sm:$0xff]
    %v57 = vld [vmem:[#allocation2 + $0x90] sm:$0xff]
    %v58 = vld [vmem:[#allocation2 + $0x98] sm:$0xff]
    %v59 = vld [vmem:[#allocation2 + $0xa0] sm:$0xff]
    %v60 = vld [vmem:[#allocation2 + $0xa8] sm:$0xff]
    %v61 = vld [vmem:[#allocation2 + $0xb0] sm:$0xff]
    %v62 = vld [vmem:[#allocation2 + $0xb8] sm:$0xff]
    %v63 = vld [vmem:[#allocation2 + $0xc0] sm:$0xff]
    %v64 = vld [vmem:[#allocation2 + $0xc8] sm:$0xff]
    %v65 = vld [vmem:[#allocation2 + $0xd0] sm:$0xff]
    %v66 = vld [vmem:[#allocation2 + $0xd8] sm:$0xff]
    %v67 = vld [vmem:[#allocation2 + $0xe0] sm:$0xff]
    %v68 = vld [vmem:[#allocation2 + $0xe8] sm:$0xff]
    %v69 = vld [vmem:[#allocation2 + $0xf0] sm:$0xff]
    %v70 = vld [vmem:[#allocation2 + $0xf8] sm:$0xff]
    %v71 = vld [vmem:[#allocation2 + $0x100] sm:$0xff]
    %v72 = vld [vmem:[#allocation2 + $0x108] sm:$0xff]
    %v73 = vld [vmem:[#allocation2 + $0x110] sm:$0xff]
    %v74 = vld [vmem:[#allocation2 + $0x118] sm:$0xff]
    %v75 = vld [vmem:[#allocation2 + $0x120] sm:$0xff]
    %v76 = vld [vmem:[#allocation2 + $0x128] sm:$0xff]
    %v77 = vld [vmem:[#allocation2 + $0x130] sm:$0xff]
    %v78 = vld [vmem:[#allocation2 + $0x138] sm:$0xff]
    %v79 = vld [vmem:[#allocation2 + $0x140] sm:$0xff]
    %v80 = vld [vmem:[#allocation2 + $0x148] sm:$0xff]
    %v81 = vld [vmem:[#allocation2 + $0x150] sm:$0xff]
    %v82 = vld [vmem:[#allocation2 + $0x158] sm:$0xff]
    %v83 = vld [vmem:[#allocation2 + $0x160] sm:$0xff]
    %v84 = vld [vmem:[#allocation2 + $0x168] sm:$0xff]
    %v85 = vld [vmem:[#allocation2 + $0x170] sm:$0xff]
    %v86 = vld [vmem:[#allocation2 + $0x178] sm:$0xff]
    %v87 = vld [vmem:[#allocation2 + $0x180] sm:$0xff]
    %v88 = vld [vmem:[#allocation2 + $0x188] sm:$0xff]
    %v89 = vld [vmem:[#allocation2 + $0x190] sm:$0xff]
    %v90 = vld [vmem:[#allocation2 + $0x198] sm:$0xff]
    %v91 = vld [vmem:[#allocation2 + $0x1a0] sm:$0xff]
    %v92 = vld [vmem:[#allocation2 + $0x1a8] sm:$0xff]
    %v93 = vld [vmem:[#allocation2 + $0x1b0] sm:$0xff]
    %v94 = vld [vmem:[#allocation2 + $0x1b8] sm:$0xff]
    %v95 = vld [vmem:[#allocation2 + $0x1c0] sm:$0xff]
    %v96 = vld [vmem:[#allocation2 + $0x1c8] sm:$0xff]
    %v97 = vld [vmem:[#allocation2 + $0x1d0] sm:$0xff]
    %v98 = vld [vmem:[#allocation2 + $0x1d8] sm:$0xff]
    %v99 = vld [vmem:[#allocation2 + $0x1e0] sm:$0xff]
    %v100 = vld [vmem:[#allocation2 + $0x1e8] sm:$0xff]
    %v101 = vld [vmem:[#allocation2 + $0x1f0] sm:$0xff]
    %v102 = vld [vmem:[#allocation2 + $0x1f8] sm:$0xff]
    %v103 = vpack.c.bf16 %v41, %v39
    %v104 = vpack.c.bf16 %v42, %v40
    %v105 = vpack.c.bf16 %v45, %v43
    %v106 = vpack.c.bf16 %v46, %v44
    %v107 = vpack.c.bf16 %v49, %v47
    %v108 = vpack.c.bf16 %v50, %v48
    %v109 = vpack.c.bf16 %v53, %v51
    %v110 = vpack.c.bf16 %v54, %v52
    %v111 = vpack.c.bf16 %v57, %v55
    %v112 = vpack.c.bf16 %v58, %v56
    %v113 = vpack.c.bf16 %v61, %v59
    %v114 = vpack.c.bf16 %v62, %v60
    %v115 = vpack.c.bf16 %v65, %v63
    %v116 = vpack.c.bf16 %v66, %v64
    %v117 = vpack.c.bf16 %v69, %v67
    %v118 = vpack.c.bf16 %v70, %v68
    %v119 = vpack.c.bf16 %v73, %v71
    %v120 = vpack.c.bf16 %v74, %v72
    %v121 = vpack.c.bf16 %v77, %v75
    %v122 = vpack.c.bf16 %v78, %v76
    %v123 = vpack.c.bf16 %v81, %v79
    %v124 = vpack.c.bf16 %v82, %v80
    %v125 = vpack.c.bf16 %v85, %v83
    %v126 = vpack.c.bf16 %v86, %v84
    %v127 = vpack.c.bf16 %v89, %v87
    %v128 = vpack.c.bf16 %v90, %v88
    %v129 = vpack.c.bf16 %v93, %v91
    %v130 = vpack.c.bf16 %v94, %v92
    %v131 = vpack.c.bf16 %v97, %v95
    %v132 = vpack.c.bf16 %v98, %v96
    %v133 = vpack.c.bf16 %v101, %v99
    %v134 = vpack.c.bf16 %v102, %v100
    %v135 = vld [vmem:[%s1] sm:$0xf]
    %v136 = vld [vmem:[%s1 + $0x4] sm:$0xf]
    %v137 = vld [vmem:[%s1 + $0x8] sm:$0xf]
    %v138 = vld [vmem:[%s1 + $0xc] sm:$0xf]
    %v139 = vld [vmem:[%s1 + $0x10] sm:$0xf]
    %v140 = vld [vmem:[%s1 + $0x14] sm:$0xf]
    %v141 = vld [vmem:[%s1 + $0x18] sm:$0xf]
    %v142 = vld [vmem:[%s1 + $0x1c] sm:$0xf]
    %v143 = vld [vmem:[%s1 + $0x20] sm:$0xf]
    %v144 = vld [vmem:[%s1 + $0x24] sm:$0xf]
    %v145 = vld [vmem:[%s1 + $0x28] sm:$0xf]
    %v146 = vld [vmem:[%s1 + $0x2c] sm:$0xf]
    %v147 = vld [vmem:[%s1 + $0x30] sm:$0xf]
    %v148 = vld [vmem:[%s1 + $0x34] sm:$0xf]
    %v149 = vld [vmem:[%s1 + $0x38] sm:$0xf]
    %v150 = vld [vmem:[%s1 + $0x3c] sm:$0xf]
    %v151 = vld [vmem:[%s1 + $0x40] sm:$0xf]
    %v152 = vld [vmem:[%s1 + $0x44] sm:$0xf]
    %v153 = vld [vmem:[%s1 + $0x48] sm:$0xf]
    %v154 = vld [vmem:[%s1 + $0x4c] sm:$0xf]
    %v155 = vld [vmem:[%s1 + $0x50] sm:$0xf]
    %v156 = vld [vmem:[%s1 + $0x54] sm:$0xf]
    %v157 = vld [vmem:[%s1 + $0x58] sm:$0xf]
    %v158 = vld [vmem:[%s1 + $0x5c] sm:$0xf]
    %v159 = vld [vmem:[%s1 + $0x60] sm:$0xf]
    %v160 = vld [vmem:[%s1 + $0x64] sm:$0xf]
    %v161 = vld [vmem:[%s1 + $0x68] sm:$0xf]
    %v162 = vld [vmem:[%s1 + $0x6c] sm:$0xf]
    %v163 = vld [vmem:[%s1 + $0x70] sm:$0xf]
    %v164 = vld [vmem:[%s1 + $0x74] sm:$0xf]
    %v165 = vld [vmem:[%s1 + $0x78] sm:$0xf]
    %v166 = vld [vmem:[%s1 + $0x7c] sm:$0xf]
    %v167 = vld [vmem:[%s2] sm:$0xf]
    %v168 = vld [vmem:[%s2 + $0x4] sm:$0xf]
    %v169 = vld [vmem:[%s2 + $0x8] sm:$0xf]
    %v170 = vld [vmem:[%s2 + $0xc] sm:$0xf]
    %v171 = vld [vmem:[%s2 + $0x10] sm:$0xf]
    %v172 = vld [vmem:[%s2 + $0x14] sm:$0xf]
    %v173 = vld [vmem:[%s2 + $0x18] sm:$0xf]
    %v174 = vld [vmem:[%s2 + $0x1c] sm:$0xf]
    %v207 = vunpack.c.l.b16 %v135
    %v208 = vunpack.c.l.b16 %v136
    %v209 = vunpack.c.l.b16 %v137
    %v210 = vunpack.c.l.b16 %v138
    %v211 = vunpack.c.l.b16 %v139
    %v212 = vunpack.c.l.b16 %v140
    %v213 = vunpack.c.l.b16 %v141
    %v214 = vunpack.c.l.b16 %v142
    %v215 = vunpack.c.l.b16 %v143
    %v216 = vunpack.c.l.b16 %v144
    %v217 = vunpack.c.l.b16 %v145
    %v218 = vunpack.c.l.b16 %v146
    %v219 = vunpack.c.l.b16 %v147
    %v220 = vunpack.c.l.b16 %v148
    %v221 = vunpack.c.l.b16 %v149
    %v222 = vunpack.c.l.b16 %v150
    %v223 = vunpack.c.l.b16 %v151
    %v224 = vunpack.c.l.b16 %v152
    %v225 = vunpack.c.l.b16 %v153
    %v226 = vunpack.c.l.b16 %v154
    %v227 = vunpack.c.l.b16 %v155
    %v228 = vunpack.c.l.b16 %v156
    %v229 = vunpack.c.l.b16 %v157
    %v230 = vunpack.c.l.b16 %v158
    %v231 = vunpack.c.l.b16 %v159
    %v232 = vunpack.c.l.b16 %v160
    %v233 = vunpack.c.l.b16 %v161
    %v234 = vunpack.c.l.b16 %v162
    %v235 = vunpack.c.l.b16 %v163
    %v236 = vunpack.c.l.b16 %v164
    %v237 = vunpack.c.l.b16 %v165
    %v238 = vunpack.c.l.b16 %v166
    %v239 = vpack.c.b16 %v208, %v207
    %v240 = vpack.c.b16 %v210, %v209
    %v241 = vpack.c.b16 %v212, %v211
    %v242 = vpack.c.b16 %v214, %v213
    %v243 = vpack.c.b16 %v216, %v215
    %v244 = vpack.c.b16 %v218, %v217
    %v245 = vpack.c.b16 %v220, %v219
    %v246 = vpack.c.b16 %v222, %v221
    %v247 = vpack.c.b16 %v224, %v223
    %v248 = vpack.c.b16 %v226, %v225
    %v249 = vpack.c.b16 %v228, %v227
    %v250 = vpack.c.b16 %v230, %v229
    %v251 = vpack.c.b16 %v232, %v231
    %v252 = vpack.c.b16 %v234, %v233
    %v253 = vpack.c.b16 %v236, %v235
    %v254 = vpack.c.b16 %v238, %v237
    %v263 = vunpack.c.l.b16 %v167
    %v264 = vunpack.c.l.b16 %v168
    %v265 = vunpack.c.l.b16 %v169
    %v266 = vunpack.c.l.b16 %v170
    %v267 = vunpack.c.l.b16 %v171
    %v268 = vunpack.c.l.b16 %v172
    %v269 = vunpack.c.l.b16 %v173
    %v270 = vunpack.c.l.b16 %v174
    %v271 = vpack.c.b16 %v264, %v263
    %v272 = vpack.c.b16 %v266, %v265
    %v273 = vpack.c.b16 %v268, %v267
    %v274 = vpack.c.b16 %v270, %v269
    %vm279 = vcmask 523264
    %v281 = vsel %vm279, %v239, 0
    %v284 = vsel %vm279, %v240, 0
    %v287 = vsel %vm279, %v241, 0
    %v290 = vsel %vm279, %v242, 0
    %v293 = vsel %vm279, %v243, 0
    %v296 = vsel %vm279, %v244, 0
    %v299 = vsel %vm279, %v245, 0
    %v302 = vsel %vm279, %v246, 0
    %v305 = vsel %vm279, %v247, 0
    %v308 = vsel %vm279, %v248, 0
    %v311 = vsel %vm279, %v249, 0
    %v314 = vsel %vm279, %v250, 0
    %v317 = vsel %vm279, %v251, 0
    %v320 = vsel %vm279, %v252, 0
    %v323 = vsel %vm279, %v253, 0
    %v326 = vsel %vm279, %v254, 0
    %328 = vmatprep.subr.bf16.mxu0 0
    %329 = vmatpush1.bf16.msra.mxu0 0
    %330 = vmatprep.subr.bf16.mxu0 0
    %331 = vmatpush1.bf16.msra.mxu0 0
    %332 = vmatprep.subr.bf16.mxu0 0
    %333 = vmatpush1.bf16.msra.mxu0 0
    %334 = vmatprep.subr.bf16.mxu0 0
    %335 = vmatpush1.bf16.msra.mxu0 0
    %336 = vmatprep.subr.bf16.mxu0 0
    %337 = vmatpush1.bf16.msra.mxu0 %v274
    %338 = vmatprep.subr.bf16.mxu0 0
    %339 = vmatpush1.bf16.msra.mxu0 %v273
    %340 = vmatprep.subr.bf16.mxu0 0
    %341 = vmatpush1.bf16.msra.mxu0 %v272
    %342 = vmatprep.subr.bf16.mxu0 0
    %343 = vmatpush1.bf16.msra.mxu0 %v271
    %344 = vmatprep.subr.bf16.mxu0 0
    %345 = vmatpush2.bf16.msra.mxu0 0
    %346 = vmatprep.subr.bf16.mxu0 0
    %347 = vmatpush2.bf16.msra.mxu0 0
    %348 = vmatprep.subr.bf16.mxu0 0
    %349 = vmatpush2.bf16.msra.mxu0 0
    %350 = vmatprep.subr.bf16.mxu0 0
    %351 = vmatpush2.bf16.msra.mxu0 0
    %352 = vmatprep.subr.bf16.mxu0 0
    %353 = vmatpush2.bf16.msra.mxu0 0
    %354 = vmatprep.subr.bf16.mxu0 0
    %355 = vmatpush2.bf16.msra.mxu0 0
    %356 = vmatprep.subr.bf16.mxu0 0
    %357 = vmatpush2.bf16.msra.mxu0 0
    %358 = vmatprep.subr.bf16.mxu0 0
    %359 = vmatpush2.bf16.msra.mxu0 0
    %360 = vmatprep.mubr.bf16.mxu0 0
    %361 = vmatmul.mubr.bf16.gmra.mxu0 %v281
    %v362 = vpop.f32.mrf.mxu0
    %v363 = vadd.f32 0.0, %v362
    %v364 = vpop.f32.mrf.mxu0
    %v365 = vpop.f32.mrf.mxu0
    %v366 = vadd.f32 0.0, %v365
    %v367 = vpop.f32.mrf.mxu0
    %368 = vmatprep.mubr.bf16.mxu0 0
    %369 = vmatmul.mubr.bf16.gmra.mxu0 %v284
    %v370 = vpop.f32.mrf.mxu0
    %v371 = vadd.f32 0.0, %v370
    %v372 = vpop.f32.mrf.mxu0
    %v373 = vpop.f32.mrf.mxu0
    %v374 = vadd.f32 0.0, %v373
    %v375 = vpop.f32.mrf.mxu0
    %376 = vmatprep.mubr.bf16.mxu0 0
    %377 = vmatmul.mubr.bf16.gmra.mxu0 %v287
    %v378 = vpop.f32.mrf.mxu0
    %v379 = vadd.f32 0.0, %v378
    %v380 = vpop.f32.mrf.mxu0
    %v381 = vpop.f32.mrf.mxu0
    %v382 = vadd.f32 0.0, %v381
    %v383 = vpop.f32.mrf.mxu0
    %384 = vmatprep.mubr.bf16.mxu0 0
    %385 = vmatmul.mubr.bf16.gmra.mxu0 %v290
    %v386 = vpop.f32.mrf.mxu0
    %v387 = vadd.f32 0.0, %v386
    %v388 = vpop.f32.mrf.mxu0
    %v389 = vpop.f32.mrf.mxu0
    %v390 = vadd.f32 0.0, %v389
    %v391 = vpop.f32.mrf.mxu0
    %392 = vmatprep.mubr.bf16.mxu0 0
    %393 = vmatmul.mubr.bf16.gmra.mxu0 %v293
    %v394 = vpop.f32.mrf.mxu0
    %v395 = vadd.f32 0.0, %v394
    %v396 = vpop.f32.mrf.mxu0
    %v397 = vpop.f32.mrf.mxu0
    %v398 = vadd.f32 0.0, %v397
    %v399 = vpop.f32.mrf.mxu0
    %400 = vmatprep.mubr.bf16.mxu0 0
    %401 = vmatmul.mubr.bf16.gmra.mxu0 %v296
    %v402 = vpop.f32.mrf.mxu0
    %v403 = vadd.f32 0.0, %v402
    %v404 = vpop.f32.mrf.mxu0
    %v405 = vpop.f32.mrf.mxu0
    %v406 = vadd.f32 0.0, %v405
    %v407 = vpop.f32.mrf.mxu0
    %408 = vmatprep.mubr.bf16.mxu0 0
    %409 = vmatmul.mubr.bf16.gmra.mxu0 %v299
    %v410 = vpop.f32.mrf.mxu0
    %v411 = vadd.f32 0.0, %v410
    %v412 = vpop.f32.mrf.mxu0
    %v413 = vpop.f32.mrf.mxu0
    %v414 = vadd.f32 0.0, %v413
    %v415 = vpop.f32.mrf.mxu0
    %416 = vmatprep.mubr.bf16.mxu0 0
    %417 = vmatmul.mubr.bf16.gmra.mxu0 %v302
    %v418 = vpop.f32.mrf.mxu0
    %v419 = vadd.f32 0.0, %v418
    %v420 = vpop.f32.mrf.mxu0
    %v421 = vpop.f32.mrf.mxu0
    %v422 = vadd.f32 0.0, %v421
    %v423 = vpop.f32.mrf.mxu0
    %424 = vmatprep.mubr.bf16.mxu0 0
    %425 = vmatmul.mubr.bf16.gmra.mxu0 %v305
    %v426 = vpop.f32.mrf.mxu0
    %v427 = vadd.f32 0.0, %v426
    %v428 = vpop.f32.mrf.mxu0
    %v429 = vpop.f32.mrf.mxu0
    %v430 = vadd.f32 0.0, %v429
    %v431 = vpop.f32.mrf.mxu0
    %432 = vmatprep.mubr.bf16.mxu0 0
    %433 = vmatmul.mubr.bf16.gmra.mxu0 %v308
    %v434 = vpop.f32.mrf.mxu0
    %v435 = vadd.f32 0.0, %v434
    %v436 = vpop.f32.mrf.mxu0
    %v437 = vpop.f32.mrf.mxu0
    %v438 = vadd.f32 0.0, %v437
    %v439 = vpop.f32.mrf.mxu0
    %440 = vmatprep.mubr.bf16.mxu0 0
    %441 = vmatmul.mubr.bf16.gmra.mxu0 %v311
    %v442 = vpop.f32.mrf.mxu0
    %v443 = vadd.f32 0.0, %v442
    %v444 = vpop.f32.mrf.mxu0
    %v445 = vpop.f32.mrf.mxu0
    %v446 = vadd.f32 0.0, %v445
    %v447 = vpop.f32.mrf.mxu0
    %448 = vmatprep.mubr.bf16.mxu0 0
    %449 = vmatmul.mubr.bf16.gmra.mxu0 %v314
    %v450 = vpop.f32.mrf.mxu0
    %v451 = vadd.f32 0.0, %v450
    %v452 = vpop.f32.mrf.mxu0
    %v453 = vpop.f32.mrf.mxu0
    %v454 = vadd.f32 0.0, %v453
    %v455 = vpop.f32.mrf.mxu0
    %456 = vmatprep.mubr.bf16.mxu0 0
    %457 = vmatmul.mubr.bf16.gmra.mxu0 %v317
    %v458 = vpop.f32.mrf.mxu0
    %v459 = vadd.f32 0.0, %v458
    %v460 = vpop.f32.mrf.mxu0
    %v461 = vpop.f32.mrf.mxu0
    %v462 = vadd.f32 0.0, %v461
    %v463 = vpop.f32.mrf.mxu0
    %464 = vmatprep.mubr.bf16.mxu0 0
    %465 = vmatmul.mubr.bf16.gmra.mxu0 %v320
    %v466 = vpop.f32.mrf.mxu0
    %v467 = vadd.f32 0.0, %v466
    %v468 = vpop.f32.mrf.mxu0
    %v469 = vpop.f32.mrf.mxu0
    %v470 = vadd.f32 0.0, %v469
    %v471 = vpop.f32.mrf.mxu0
    %472 = vmatprep.mubr.bf16.mxu0 0
    %473 = vmatmul.mubr.bf16.gmra.mxu0 %v323
    %v474 = vpop.f32.mrf.mxu0
    %v475 = vadd.f32 0.0, %v474
    %v476 = vpop.f32.mrf.mxu0
    %v477 = vpop.f32.mrf.mxu0
    %v478 = vadd.f32 0.0, %v477
    %v479 = vpop.f32.mrf.mxu0
    %480 = vmatprep.mubr.bf16.mxu0 0
    %481 = vmatmul.mubr.bf16.gmra.mxu0 %v326
    %v482 = vpop.f32.mrf.mxu0
    %v483 = vadd.f32 0.0, %v482
    %v484 = vpop.f32.mrf.mxu0
    %v485 = vpop.f32.mrf.mxu0
    %v486 = vadd.f32 0.0, %v485
    %v487 = vpop.f32.mrf.mxu0
    %488 = vdwg.mxu0
    %v489 = vpack.c.bf16 %v366, %v363
    %v490 = vpack.c.bf16 %v374, %v371
    %v491 = vpack.c.bf16 %v382, %v379
    %v492 = vpack.c.bf16 %v390, %v387
    %v493 = vpack.c.bf16 %v398, %v395
    %v494 = vpack.c.bf16 %v406, %v403
    %v495 = vpack.c.bf16 %v414, %v411
    %v496 = vpack.c.bf16 %v422, %v419
    %v497 = vpack.c.bf16 %v430, %v427
    %v498 = vpack.c.bf16 %v438, %v435
    %v499 = vpack.c.bf16 %v446, %v443
    %v500 = vpack.c.bf16 %v454, %v451
    %v501 = vpack.c.bf16 %v462, %v459
    %v502 = vpack.c.bf16 %v470, %v467
    %v503 = vpack.c.bf16 %v478, %v475
    %v504 = vpack.c.bf16 %v486, %v483
    %v505 = vld [vmem:[%s3] sm:$0x1]
    %v507 = vlaneseq
    %v508 = vshrl.u32 %v507, 7
    %v509 = vsub.s32 0, %v508
    %v510 = vrot.slane %v505, %v509
    %512 = vmatprep.subr.bf16.mxu0 0
    %513 = vmatpush1.bf16.msra.mxu0 %v496
    %514 = vmatprep.subr.bf16.mxu0 0
    %515 = vmatpush1.bf16.msra.mxu0 %v495
    %516 = vmatprep.subr.bf16.mxu0 0
    %517 = vmatpush1.bf16.msra.mxu0 %v494
    %518 = vmatprep.subr.bf16.mxu0 0
    %519 = vmatpush1.bf16.msra.mxu0 %v493
    %520 = vmatprep.subr.bf16.mxu0 0
    %521 = vmatpush1.bf16.msra.mxu0 %v492
    %522 = vmatprep.subr.bf16.mxu0 0
    %523 = vmatpush1.bf16.msra.mxu0 %v491
    %524 = vmatprep.subr.bf16.mxu0 0
    %525 = vmatpush1.bf16.msra.mxu0 %v490
    %526 = vmatprep.subr.bf16.mxu0 0
    %527 = vmatpush1.bf16.msra.mxu0 %v489
    %528 = vmatprep.subr.bf16.mxu0 0
    %529 = vmatpush2.bf16.msra.mxu0 %v504
    %530 = vmatprep.subr.bf16.mxu0 0
    %531 = vmatpush2.bf16.msra.mxu0 %v503
    %532 = vmatprep.subr.bf16.mxu0 0
    %533 = vmatpush2.bf16.msra.mxu0 %v502
    %534 = vmatprep.subr.bf16.mxu0 0
    %535 = vmatpush2.bf16.msra.mxu0 %v501
    %536 = vmatprep.subr.bf16.mxu0 0
    %537 = vmatpush2.bf16.msra.mxu0 %v500
    %538 = vmatprep.subr.bf16.mxu0 0
    %539 = vmatpush2.bf16.msra.mxu0 %v499
    %540 = vmatprep.subr.bf16.mxu0 0
    %541 = vmatpush2.bf16.msra.mxu0 %v498
    %542 = vmatprep.subr.bf16.mxu0 0
    %543 = vmatpush2.bf16.msra.mxu0 %v497
    %544 = vmatprep.mubr.bf16.mxu0 %v104
    %545 = vmatmul.mubr.bf16.gmra.mxu0 %v103
    %v546 = vpop.f32.mrf.mxu0
    %v547 = vadd.f32 %v510, %v546
    %v548 = vpop.f32.mrf.mxu0
    %v549 = vpop.f32.mrf.mxu0
    %v550 = vadd.f32 %v510, %v549
    %v551 = vpop.f32.mrf.mxu0
    %552 = vmatprep.mubr.bf16.mxu0 %v106
    %553 = vmatmul.mubr.bf16.gmra.mxu0 %v105
    %v554 = vpop.f32.mrf.mxu0
    %v555 = vadd.f32 %v510, %v554
    %v556 = vpop.f32.mrf.mxu0
    %v557 = vpop.f32.mrf.mxu0
    %v558 = vadd.f32 %v510, %v557
    %v559 = vpop.f32.mrf.mxu0
    %560 = vmatprep.mubr.bf16.mxu0 %v108
    %561 = vmatmul.mubr.bf16.gmra.mxu0 %v107
    %v562 = vpop.f32.mrf.mxu0
    %v563 = vadd.f32 %v510, %v562
    %v564 = vpop.f32.mrf.mxu0
    %v565 = vpop.f32.mrf.mxu0
    %v566 = vadd.f32 %v510, %v565
    %v567 = vpop.f32.mrf.mxu0
    %568 = vmatprep.mubr.bf16.mxu0 %v110
    %569 = vmatmul.mubr.bf16.gmra.mxu0 %v109
    %v570 = vpop.f32.mrf.mxu0
    %v571 = vadd.f32 %v510, %v570
    %v572 = vpop.f32.mrf.mxu0
    %v573 = vpop.f32.mrf.mxu0
    %v574 = vadd.f32 %v510, %v573
    %v575 = vpop.f32.mrf.mxu0
    %576 = vmatprep.mubr.bf16.mxu0 %v112
    %577 = vmatmul.mubr.bf16.gmra.mxu0 %v111
    %v578 = vpop.f32.mrf.mxu0
    %v579 = vadd.f32 %v510, %v578
    %v580 = vpop.f32.mrf.mxu0
    %v581 = vpop.f32.mrf.mxu0
    %v582 = vadd.f32 %v510, %v581
    %v583 = vpop.f32.mrf.mxu0
    %584 = vmatprep.mubr.bf16.mxu0 %v114
    %585 = vmatmul.mubr.bf16.gmra.mxu0 %v113
    %v586 = vpop.f32.mrf.mxu0
    %v587 = vadd.f32 %v510, %v586
    %v588 = vpop.f32.mrf.mxu0
    %v589 = vpop.f32.mrf.mxu0
    %v590 = vadd.f32 %v510, %v589
    %v591 = vpop.f32.mrf.mxu0
    %592 = vmatprep.mubr.bf16.mxu0 %v116
    %593 = vmatmul.mubr.bf16.gmra.mxu0 %v115
    %v594 = vpop.f32.mrf.mxu0
    %v595 = vadd.f32 %v510, %v594
    %v596 = vpop.f32.mrf.mxu0
    %v597 = vpop.f32.mrf.mxu0
    %v598 = vadd.f32 %v510, %v597
    %v599 = vpop.f32.mrf.mxu0
    %600 = vmatprep.mubr.bf16.mxu0 %v118
    %601 = vmatmul.mubr.bf16.gmra.mxu0 %v117
    %v602 = vpop.f32.mrf.mxu0
    %v603 = vadd.f32 %v510, %v602
    %v604 = vpop.f32.mrf.mxu0
    %v605 = vpop.f32.mrf.mxu0
    %v606 = vadd.f32 %v510, %v605
    %v607 = vpop.f32.mrf.mxu0
    %608 = vmatprep.mubr.bf16.mxu0 %v120
    %609 = vmatmul.mubr.bf16.gmra.mxu0 %v119
    %v610 = vpop.f32.mrf.mxu0
    %v611 = vadd.f32 %v510, %v610
    %v612 = vpop.f32.mrf.mxu0
    %v613 = vpop.f32.mrf.mxu0
    %v614 = vadd.f32 %v510, %v613
    %v615 = vpop.f32.mrf.mxu0
    %616 = vmatprep.mubr.bf16.mxu0 %v122
    %617 = vmatmul.mubr.bf16.gmra.mxu0 %v121
    %v618 = vpop.f32.mrf.mxu0
    %v619 = vadd.f32 %v510, %v618
    %v620 = vpop.f32.mrf.mxu0
    %v621 = vpop.f32.mrf.mxu0
    %v622 = vadd.f32 %v510, %v621
    %v623 = vpop.f32.mrf.mxu0
    %624 = vmatprep.mubr.bf16.mxu0 %v124
    %625 = vmatmul.mubr.bf16.gmra.mxu0 %v123
    %v626 = vpop.f32.mrf.mxu0
    %v627 = vadd.f32 %v510, %v626
    %v628 = vpop.f32.mrf.mxu0
    %v629 = vpop.f32.mrf.mxu0
    %v630 = vadd.f32 %v510, %v629
    %v631 = vpop.f32.mrf.mxu0
    %632 = vmatprep.mubr.bf16.mxu0 %v126
    %633 = vmatmul.mubr.bf16.gmra.mxu0 %v125
    %v634 = vpop.f32.mrf.mxu0
    %v635 = vadd.f32 %v510, %v634
    %v636 = vpop.f32.mrf.mxu0
    %v637 = vpop.f32.mrf.mxu0
    %v638 = vadd.f32 %v510, %v637
    %v639 = vpop.f32.mrf.mxu0
    %640 = vmatprep.mubr.bf16.mxu0 %v128
    %641 = vmatmul.mubr.bf16.gmra.mxu0 %v127
    %v642 = vpop.f32.mrf.mxu0
    %v643 = vadd.f32 %v510, %v642
    %v644 = vpop.f32.mrf.mxu0
    %v645 = vpop.f32.mrf.mxu0
    %v646 = vadd.f32 %v510, %v645
    %v647 = vpop.f32.mrf.mxu0
    %648 = vmatprep.mubr.bf16.mxu0 %v130
    %649 = vmatmul.mubr.bf16.gmra.mxu0 %v129
    %v650 = vpop.f32.mrf.mxu0
    %v651 = vadd.f32 %v510, %v650
    %v652 = vpop.f32.mrf.mxu0
    %v653 = vpop.f32.mrf.mxu0
    %v654 = vadd.f32 %v510, %v653
    %v655 = vpop.f32.mrf.mxu0
    %656 = vmatprep.mubr.bf16.mxu0 %v132
    %657 = vmatmul.mubr.bf16.gmra.mxu0 %v131
    %v658 = vpop.f32.mrf.mxu0
    %v659 = vadd.f32 %v510, %v658
    %v660 = vpop.f32.mrf.mxu0
    %v661 = vpop.f32.mrf.mxu0
    %v662 = vadd.f32 %v510, %v661
    %v663 = vpop.f32.mrf.mxu0
    %664 = vmatprep.mubr.bf16.mxu0 %v134
    %665 = vmatmul.mubr.bf16.gmra.mxu0 %v133
    %v666 = vpop.f32.mrf.mxu0
    %v667 = vadd.f32 %v510, %v666
    %v668 = vpop.f32.mrf.mxu0
    %v669 = vpop.f32.mrf.mxu0
    %v670 = vadd.f32 %v510, %v669
    %v671 = vpop.f32.mrf.mxu0
    %672 = vdwg.mxu0
    %v673 = vmax.f32 %v547, 0.0
    %v674 = vmax.f32 %v550, 0.0
    %v675 = vmax.f32 %v555, 0.0
    %v676 = vmax.f32 %v558, 0.0
    %v677 = vmax.f32 %v563, 0.0
    %v678 = vmax.f32 %v566, 0.0
    %v679 = vmax.f32 %v571, 0.0
    %v680 = vmax.f32 %v574, 0.0
    %v681 = vmax.f32 %v579, 0.0
    %v682 = vmax.f32 %v582, 0.0
    %v683 = vmax.f32 %v587, 0.0
    %v684 = vmax.f32 %v590, 0.0
    %v685 = vmax.f32 %v595, 0.0
    %v686 = vmax.f32 %v598, 0.0
    %v687 = vmax.f32 %v603, 0.0
    %v688 = vmax.f32 %v606, 0.0
    %v689 = vmax.f32 %v611, 0.0
    %v690 = vmax.f32 %v614, 0.0
    %v691 = vmax.f32 %v619, 0.0
    %v692 = vmax.f32 %v622, 0.0
    %v693 = vmax.f32 %v627, 0.0
    %v694 = vmax.f32 %v630, 0.0
    %v695 = vmax.f32 %v635, 0.0
    %v696 = vmax.f32 %v638, 0.0
    %v697 = vmax.f32 %v643, 0.0
    %v698 = vmax.f32 %v646, 0.0
    %v699 = vmax.f32 %v651, 0.0
    %v700 = vmax.f32 %v654, 0.0
    %v701 = vmax.f32 %v659, 0.0
    %v702 = vmax.f32 %v662, 0.0
    %v703 = vmax.f32 %v667, 0.0
    %v704 = vmax.f32 %v670, 0.0
    %v705 = vpack.c.bf16 %v674, %v673
    %v706 = vpack.c.bf16 %v676, %v675
    %v707 = vpack.c.bf16 %v678, %v677
    %v708 = vpack.c.bf16 %v680, %v679
    %v709 = vpack.c.bf16 %v682, %v681
    %v710 = vpack.c.bf16 %v684, %v683
    %v711 = vpack.c.bf16 %v686, %v685
    %v712 = vpack.c.bf16 %v688, %v687
    %v713 = vpack.c.bf16 %v690, %v689
    %v714 = vpack.c.bf16 %v692, %v691
    %v715 = vpack.c.bf16 %v694, %v693
    %v716 = vpack.c.bf16 %v696, %v695
    %v717 = vpack.c.bf16 %v698, %v697
    %v718 = vpack.c.bf16 %v700, %v699
    %v719 = vpack.c.bf16 %v702, %v701
    %v720 = vpack.c.bf16 %v704, %v703
    %v721 = vld [vmem:[%s4] sm:$0xf]
    %v722 = vld [vmem:[%s4 + $0x4] sm:$0xf]
    %v723 = vld [vmem:[%s4 + $0x8] sm:$0xf]
    %v724 = vld [vmem:[%s4 + $0xc] sm:$0xf]
    %v725 = vld [vmem:[%s4 + $0x10] sm:$0xf]
    %v726 = vld [vmem:[%s4 + $0x14] sm:$0xf]
    %v727 = vld [vmem:[%s4 + $0x18] sm:$0xf]
    %v728 = vld [vmem:[%s4 + $0x1c] sm:$0xf]
    %v729 = vld [vmem:[%s4 + $0x20] sm:$0xf]
    %v730 = vld [vmem:[%s4 + $0x24] sm:$0xf]
    %v731 = vld [vmem:[%s4 + $0x28] sm:$0xf]
    %v732 = vld [vmem:[%s4 + $0x2c] sm:$0xf]
    %v733 = vld [vmem:[%s4 + $0x30] sm:$0xf]
    %v734 = vld [vmem:[%s4 + $0x34] sm:$0xf]
    %v735 = vld [vmem:[%s4 + $0x38] sm:$0xf]
    %v736 = vld [vmem:[%s4 + $0x3c] sm:$0xf]
    %v753 = vunpack.c.l.b16 %v721
    %v754 = vunpack.c.l.b16 %v722
    %v755 = vunpack.c.l.b16 %v723
    %v756 = vunpack.c.l.b16 %v724
    %v757 = vunpack.c.l.b16 %v725
    %v758 = vunpack.c.l.b16 %v726
    %v759 = vunpack.c.l.b16 %v727
    %v760 = vunpack.c.l.b16 %v728
    %v761 = vunpack.c.l.b16 %v729
    %v762 = vunpack.c.l.b16 %v730
    %v763 = vunpack.c.l.b16 %v731
    %v764 = vunpack.c.l.b16 %v732
    %v765 = vunpack.c.l.b16 %v733
    %v766 = vunpack.c.l.b16 %v734
    %v767 = vunpack.c.l.b16 %v735
    %v768 = vunpack.c.l.b16 %v736
    %v769 = vpack.c.b16 %v754, %v753
    %v770 = vpack.c.b16 %v756, %v755
    %v771 = vpack.c.b16 %v758, %v757
    %v772 = vpack.c.b16 %v760, %v759
    %v773 = vpack.c.b16 %v762, %v761
    %v774 = vpack.c.b16 %v764, %v763
    %v775 = vpack.c.b16 %v766, %v765
    %v776 = vpack.c.b16 %v768, %v767
    %785 = vmatprep.subr.bf16.mxu0 0
    %786 = vmatpush1.bf16.msra.mxu0 %v776
    %787 = vmatprep.subr.bf16.mxu0 0
    %788 = vmatpush1.bf16.msra.mxu0 %v775
    %789 = vmatprep.subr.bf16.mxu0 0
    %790 = vmatpush1.bf16.msra.mxu0 %v774
    %791 = vmatprep.subr.bf16.mxu0 0
    %792 = vmatpush1.bf16.msra.mxu0 %v773
    %793 = vmatprep.subr.bf16.mxu0 0
    %794 = vmatpush1.bf16.msra.mxu0 %v772
    %795 = vmatprep.subr.bf16.mxu0 0
    %796 = vmatpush1.bf16.msra.mxu0 %v771
    %797 = vmatprep.subr.bf16.mxu0 0
    %798 = vmatpush1.bf16.msra.mxu0 %v770
    %799 = vmatprep.subr.bf16.mxu0 0
    %800 = vmatpush1.bf16.msra.mxu0 %v769
    %801 = vmatprep.subr.bf16.mxu0 0
    %802 = vmatpush2.bf16.msra.mxu0 0
    %803 = vmatprep.subr.bf16.mxu0 0
    %804 = vmatpush2.bf16.msra.mxu0 0
    %805 = vmatprep.subr.bf16.mxu0 0
    %806 = vmatpush2.bf16.msra.mxu0 0
    %807 = vmatprep.subr.bf16.mxu0 0
    %808 = vmatpush2.bf16.msra.mxu0 0
    %809 = vmatprep.subr.bf16.mxu0 0
    %810 = vmatpush2.bf16.msra.mxu0 0
    %811 = vmatprep.subr.bf16.mxu0 0
    %812 = vmatpush2.bf16.msra.mxu0 0
    %813 = vmatprep.subr.bf16.mxu0 0
    %814 = vmatpush2.bf16.msra.mxu0 0
    %815 = vmatprep.subr.bf16.mxu0 0
    %816 = vmatpush2.bf16.msra.mxu0 0
    %817 = vmatprep.mubr.bf16.mxu0 0
    %818 = vmatmul.mubr.bf16.gmra.mxu0 %v705
    %v819 = vpop.f32.mrf.mxu0
    %v820 = vadd.f32 0.0, %v819
    %v821 = vpop.f32.mrf.mxu0
    %v822 = vpop.f32.mrf.mxu0
    %v823 = vadd.f32 0.0, %v822
    %v824 = vpop.f32.mrf.mxu0
    %825 = vmatprep.mubr.bf16.mxu0 0
    %826 = vmatmul.mubr.bf16.gmra.mxu0 %v706
    %v827 = vpop.f32.mrf.mxu0
    %v828 = vadd.f32 0.0, %v827
    %v829 = vpop.f32.mrf.mxu0
    %v830 = vpop.f32.mrf.mxu0
    %v831 = vadd.f32 0.0, %v830
    %v832 = vpop.f32.mrf.mxu0
    %833 = vmatprep.mubr.bf16.mxu0 0
    %834 = vmatmul.mubr.bf16.gmra.mxu0 %v707
    %v835 = vpop.f32.mrf.mxu0
    %v836 = vadd.f32 0.0, %v835
    %v837 = vpop.f32.mrf.mxu0
    %v838 = vpop.f32.mrf.mxu0
    %v839 = vadd.f32 0.0, %v838
    %v840 = vpop.f32.mrf.mxu0
    %841 = vmatprep.mubr.bf16.mxu0 0
    %842 = vmatmul.mubr.bf16.gmra.mxu0 %v708
    %v843 = vpop.f32.mrf.mxu0
    %v844 = vadd.f32 0.0, %v843
    %v845 = vpop.f32.mrf.mxu0
    %v846 = vpop.f32.mrf.mxu0
    %v847 = vadd.f32 0.0, %v846
    %v848 = vpop.f32.mrf.mxu0
    %849 = vmatprep.mubr.bf16.mxu0 0
    %850 = vmatmul.mubr.bf16.gmra.mxu0 %v709
    %v851 = vpop.f32.mrf.mxu0
    %v852 = vadd.f32 0.0, %v851
    %v853 = vpop.f32.mrf.mxu0
    %v854 = vpop.f32.mrf.mxu0
    %v855 = vadd.f32 0.0, %v854
    %v856 = vpop.f32.mrf.mxu0
    %857 = vmatprep.mubr.bf16.mxu0 0
    %858 = vmatmul.mubr.bf16.gmra.mxu0 %v710
    %v859 = vpop.f32.mrf.mxu0
    %v860 = vadd.f32 0.0, %v859
    %v861 = vpop.f32.mrf.mxu0
    %v862 = vpop.f32.mrf.mxu0
    %v863 = vadd.f32 0.0, %v862
    %v864 = vpop.f32.mrf.mxu0
    %865 = vmatprep.mubr.bf16.mxu0 0
    %866 = vmatmul.mubr.bf16.gmra.mxu0 %v711
    %v867 = vpop.f32.mrf.mxu0
    %v868 = vadd.f32 0.0, %v867
    %v869 = vpop.f32.mrf.mxu0
    %v870 = vpop.f32.mrf.mxu0
    %v871 = vadd.f32 0.0, %v870
    %v872 = vpop.f32.mrf.mxu0
    %873 = vmatprep.mubr.bf16.mxu0 0
    %874 = vmatmul.mubr.bf16.gmra.mxu0 %v712
    %v875 = vpop.f32.mrf.mxu0
    %v876 = vadd.f32 0.0, %v875
    %v877 = vpop.f32.mrf.mxu0
    %v878 = vpop.f32.mrf.mxu0
    %v879 = vadd.f32 0.0, %v878
    %v880 = vpop.f32.mrf.mxu0
    %881 = vmatprep.mubr.bf16.mxu0 0
    %882 = vmatmul.mubr.bf16.gmra.mxu0 %v713
    %v883 = vpop.f32.mrf.mxu0
    %v884 = vadd.f32 0.0, %v883
    %v885 = vpop.f32.mrf.mxu0
    %v886 = vpop.f32.mrf.mxu0
    %v887 = vadd.f32 0.0, %v886
    %v888 = vpop.f32.mrf.mxu0
    %889 = vmatprep.mubr.bf16.mxu0 0
    %890 = vmatmul.mubr.bf16.gmra.mxu0 %v714
    %v891 = vpop.f32.mrf.mxu0
    %v892 = vadd.f32 0.0, %v891
    %v893 = vpop.f32.mrf.mxu0
    %v894 = vpop.f32.mrf.mxu0
    %v895 = vadd.f32 0.0, %v894
    %v896 = vpop.f32.mrf.mxu0
    %897 = vmatprep.mubr.bf16.mxu0 0
    %898 = vmatmul.mubr.bf16.gmra.mxu0 %v715
    %v899 = vpop.f32.mrf.mxu0
    %v900 = vadd.f32 0.0, %v899
    %v901 = vpop.f32.mrf.mxu0
    %v902 = vpop.f32.mrf.mxu0
    %v903 = vadd.f32 0.0, %v902
    %v904 = vpop.f32.mrf.mxu0
    %905 = vmatprep.mubr.bf16.mxu0 0
    %906 = vmatmul.mubr.bf16.gmra.mxu0 %v716
    %v907 = vpop.f32.mrf.mxu0
    %v908 = vadd.f32 0.0, %v907
    %v909 = vpop.f32.mrf.mxu0
    %v910 = vpop.f32.mrf.mxu0
    %v911 = vadd.f32 0.0, %v910
    %v912 = vpop.f32.mrf.mxu0
    %913 = vmatprep.mubr.bf16.mxu0 0
    %914 = vmatmul.mubr.bf16.gmra.mxu0 %v717
    %v915 = vpop.f32.mrf.mxu0
    %v916 = vadd.f32 0.0, %v915
    %v917 = vpop.f32.mrf.mxu0
    %v918 = vpop.f32.mrf.mxu0
    %v919 = vadd.f32 0.0, %v918
    %v920 = vpop.f32.mrf.mxu0
    %921 = vmatprep.mubr.bf16.mxu0 0
    %922 = vmatmul.mubr.bf16.gmra.mxu0 %v718
    %v923 = vpop.f32.mrf.mxu0
    %v924 = vadd.f32 0.0, %v923
    %v925 = vpop.f32.mrf.mxu0
    %v926 = vpop.f32.mrf.mxu0
    %v927 = vadd.f32 0.0, %v926
    %v928 = vpop.f32.mrf.mxu0
    %929 = vmatprep.mubr.bf16.mxu0 0
    %930 = vmatmul.mubr.bf16.gmra.mxu0 %v719
    %v931 = vpop.f32.mrf.mxu0
    %v932 = vadd.f32 0.0, %v931
    %v933 = vpop.f32.mrf.mxu0
    %v934 = vpop.f32.mrf.mxu0
    %v935 = vadd.f32 0.0, %v934
    %v936 = vpop.f32.mrf.mxu0
    %937 = vmatprep.mubr.bf16.mxu0 0
    %938 = vmatmul.mubr.bf16.gmra.mxu0 %v720
    %v939 = vpop.f32.mrf.mxu0
    %v940 = vadd.f32 0.0, %v939
    %v941 = vpop.f32.mrf.mxu0
    %v942 = vpop.f32.mrf.mxu0
    %v943 = vadd.f32 0.0, %v942
    %v944 = vpop.f32.mrf.mxu0
    %945 = vdwg.mxu0
    %v946 = vpack.c.bf16 %v823, %v820
    %v947 = vpack.c.bf16 %v831, %v828
    %v948 = vpack.c.bf16 %v839, %v836
    %v949 = vpack.c.bf16 %v847, %v844
    %v950 = vpack.c.bf16 %v855, %v852
    %v951 = vpack.c.bf16 %v863, %v860
    %v952 = vpack.c.bf16 %v871, %v868
    %v953 = vpack.c.bf16 %v879, %v876
    %v954 = vpack.c.bf16 %v887, %v884
    %v955 = vpack.c.bf16 %v895, %v892
    %v956 = vpack.c.bf16 %v903, %v900
    %v957 = vpack.c.bf16 %v911, %v908
    %v958 = vpack.c.bf16 %v919, %v916
    %v959 = vpack.c.bf16 %v927, %v924
    %v960 = vpack.c.bf16 %v935, %v932
    %v961 = vpack.c.bf16 %v943, %v940
    %v962 = vld [vmem:[%s5] sm:$0x1]
    %v964 = vlaneseq
    %v965 = vshrl.u32 %v964, 7
    %v966 = vsub.s32 0, %v965
    %v967 = vrot.slane %v962, %v966
    %969 = vmatprep.subr.bf16.mxu0 0
    %970 = vmatpush1.bf16.msra.mxu0 %v953
    %971 = vmatprep.subr.bf16.mxu0 0
    %972 = vmatpush1.bf16.msra.mxu0 %v952
    %973 = vmatprep.subr.bf16.mxu0 0
    %974 = vmatpush1.bf16.msra.mxu0 %v951
    %975 = vmatprep.subr.bf16.mxu0 0
    %976 = vmatpush1.bf16.msra.mxu0 %v950
    %977 = vmatprep.subr.bf16.mxu0 0
    %978 = vmatpush1.bf16.msra.mxu0 %v949
    %979 = vmatprep.subr.bf16.mxu0 0
    %980 = vmatpush1.bf16.msra.mxu0 %v948
    %981 = vmatprep.subr.bf16.mxu0 0
    %982 = vmatpush1.bf16.msra.mxu0 %v947
    %983 = vmatprep.subr.bf16.mxu0 0
    %984 = vmatpush1.bf16.msra.mxu0 %v946
    %985 = vmatprep.subr.bf16.mxu0 0
    %986 = vmatpush2.bf16.msra.mxu0 %v961
    %987 = vmatprep.subr.bf16.mxu0 0
    %988 = vmatpush2.bf16.msra.mxu0 %v960
    %989 = vmatprep.subr.bf16.mxu0 0
    %990 = vmatpush2.bf16.msra.mxu0 %v959
    %991 = vmatprep.subr.bf16.mxu0 0
    %992 = vmatpush2.bf16.msra.mxu0 %v958
    %993 = vmatprep.subr.bf16.mxu0 0
    %994 = vmatpush2.bf16.msra.mxu0 %v957
    %995 = vmatprep.subr.bf16.mxu0 0
    %996 = vmatpush2.bf16.msra.mxu0 %v956
    %997 = vmatprep.subr.bf16.mxu0 0
    %998 = vmatpush2.bf16.msra.mxu0 %v955
    %999 = vmatprep.subr.bf16.mxu0 0
    %1000 = vmatpush2.bf16.msra.mxu0 %v954
    %1001 = vmatprep.mubr.bf16.mxu0 %v104
    %1002 = vmatmul.mubr.bf16.gmra.mxu0 %v103
    %v1003 = vpop.f32.mrf.mxu0
    %v1004 = vadd.f32 %v967, %v1003
    %v1005 = vpop.f32.mrf.mxu0
    %v1006 = vpop.f32.mrf.mxu0
    %v1007 = vadd.f32 %v967, %v1006
    %v1008 = vpop.f32.mrf.mxu0
    %1009 = vmatprep.mubr.bf16.mxu0 %v106
    %1010 = vmatmul.mubr.bf16.gmra.mxu0 %v105
    %v1011 = vpop.f32.mrf.mxu0
    %v1012 = vadd.f32 %v967, %v1011
    %v1013 = vpop.f32.mrf.mxu0
    %v1014 = vpop.f32.mrf.mxu0
    %v1015 = vadd.f32 %v967, %v1014
    %v1016 = vpop.f32.mrf.mxu0
    %1017 = vmatprep.mubr.bf16.mxu0 %v108
    %1018 = vmatmul.mubr.bf16.gmra.mxu0 %v107
    %v1019 = vpop.f32.mrf.mxu0
    %v1020 = vadd.f32 %v967, %v1019
    %v1021 = vpop.f32.mrf.mxu0
    %v1022 = vpop.f32.mrf.mxu0
    %v1023 = vadd.f32 %v967, %v1022
    %v1024 = vpop.f32.mrf.mxu0
    %1025 = vmatprep.mubr.bf16.mxu0 %v110
    %1026 = vmatmul.mubr.bf16.gmra.mxu0 %v109
    %v1027 = vpop.f32.mrf.mxu0
    %v1028 = vadd.f32 %v967, %v1027
    %v1029 = vpop.f32.mrf.mxu0
    %v1030 = vpop.f32.mrf.mxu0
    %v1031 = vadd.f32 %v967, %v1030
    %v1032 = vpop.f32.mrf.mxu0
    %1033 = vmatprep.mubr.bf16.mxu0 %v112
    %1034 = vmatmul.mubr.bf16.gmra.mxu0 %v111
    %v1035 = vpop.f32.mrf.mxu0
    %v1036 = vadd.f32 %v967, %v1035
    %v1037 = vpop.f32.mrf.mxu0
    %v1038 = vpop.f32.mrf.mxu0
    %v1039 = vadd.f32 %v967, %v1038
    %v1040 = vpop.f32.mrf.mxu0
    %1041 = vmatprep.mubr.bf16.mxu0 %v114
    %1042 = vmatmul.mubr.bf16.gmra.mxu0 %v113
    %v1043 = vpop.f32.mrf.mxu0
    %v1044 = vadd.f32 %v967, %v1043
    %v1045 = vpop.f32.mrf.mxu0
    %v1046 = vpop.f32.mrf.mxu0
    %v1047 = vadd.f32 %v967, %v1046
    %v1048 = vpop.f32.mrf.mxu0
    %1049 = vmatprep.mubr.bf16.mxu0 %v116
    %1050 = vmatmul.mubr.bf16.gmra.mxu0 %v115
    %v1051 = vpop.f32.mrf.mxu0
    %v1052 = vadd.f32 %v967, %v1051
    %v1053 = vpop.f32.mrf.mxu0
    %v1054 = vpop.f32.mrf.mxu0
    %v1055 = vadd.f32 %v967, %v1054
    %v1056 = vpop.f32.mrf.mxu0
    %1057 = vmatprep.mubr.bf16.mxu0 %v118
    %1058 = vmatmul.mubr.bf16.gmra.mxu0 %v117
    %v1059 = vpop.f32.mrf.mxu0
    %v1060 = vadd.f32 %v967, %v1059
    %v1061 = vpop.f32.mrf.mxu0
    %v1062 = vpop.f32.mrf.mxu0
    %v1063 = vadd.f32 %v967, %v1062
    %v1064 = vpop.f32.mrf.mxu0
    %1065 = vmatprep.mubr.bf16.mxu0 %v120
    %1066 = vmatmul.mubr.bf16.gmra.mxu0 %v119
    %v1067 = vpop.f32.mrf.mxu0
    %v1068 = vadd.f32 %v967, %v1067
    %v1069 = vpop.f32.mrf.mxu0
    %v1070 = vpop.f32.mrf.mxu0
    %v1071 = vadd.f32 %v967, %v1070
    %v1072 = vpop.f32.mrf.mxu0
    %1073 = vmatprep.mubr.bf16.mxu0 %v122
    %1074 = vmatmul.mubr.bf16.gmra.mxu0 %v121
    %v1075 = vpop.f32.mrf.mxu0
    %v1076 = vadd.f32 %v967, %v1075
    %v1077 = vpop.f32.mrf.mxu0
    %v1078 = vpop.f32.mrf.mxu0
    %v1079 = vadd.f32 %v967, %v1078
    %v1080 = vpop.f32.mrf.mxu0
    %1081 = vmatprep.mubr.bf16.mxu0 %v124
    %1082 = vmatmul.mubr.bf16.gmra.mxu0 %v123
    %v1083 = vpop.f32.mrf.mxu0
    %v1084 = vadd.f32 %v967, %v1083
    %v1085 = vpop.f32.mrf.mxu0
    %v1086 = vpop.f32.mrf.mxu0
    %v1087 = vadd.f32 %v967, %v1086
    %v1088 = vpop.f32.mrf.mxu0
    %1089 = vmatprep.mubr.bf16.mxu0 %v126
    %1090 = vmatmul.mubr.bf16.gmra.mxu0 %v125
    %v1091 = vpop.f32.mrf.mxu0
    %v1092 = vadd.f32 %v967, %v1091
    %v1093 = vpop.f32.mrf.mxu0
    %v1094 = vpop.f32.mrf.mxu0
    %v1095 = vadd.f32 %v967, %v1094
    %v1096 = vpop.f32.mrf.mxu0
    %1097 = vmatprep.mubr.bf16.mxu0 %v128
    %1098 = vmatmul.mubr.bf16.gmra.mxu0 %v127
    %v1099 = vpop.f32.mrf.mxu0
    %v1100 = vadd.f32 %v967, %v1099
    %v1101 = vpop.f32.mrf.mxu0
    %v1102 = vpop.f32.mrf.mxu0
    %v1103 = vadd.f32 %v967, %v1102
    %v1104 = vpop.f32.mrf.mxu0
    %1105 = vmatprep.mubr.bf16.mxu0 %v130
    %1106 = vmatmul.mubr.bf16.gmra.mxu0 %v129
    %v1107 = vpop.f32.mrf.mxu0
    %v1108 = vadd.f32 %v967, %v1107
    %v1109 = vpop.f32.mrf.mxu0
    %v1110 = vpop.f32.mrf.mxu0
    %v1111 = vadd.f32 %v967, %v1110
    %v1112 = vpop.f32.mrf.mxu0
    %1113 = vmatprep.mubr.bf16.mxu0 %v132
    %1114 = vmatmul.mubr.bf16.gmra.mxu0 %v131
    %v1115 = vpop.f32.mrf.mxu0
    %v1116 = vadd.f32 %v967, %v1115
    %v1117 = vpop.f32.mrf.mxu0
    %v1118 = vpop.f32.mrf.mxu0
    %v1119 = vadd.f32 %v967, %v1118
    %v1120 = vpop.f32.mrf.mxu0
    %1121 = vmatprep.mubr.bf16.mxu0 %v134
    %1122 = vmatmul.mubr.bf16.gmra.mxu0 %v133
    %v1123 = vpop.f32.mrf.mxu0
    %v1124 = vadd.f32 %v967, %v1123
    %v1125 = vpop.f32.mrf.mxu0
    %v1126 = vpop.f32.mrf.mxu0
    %v1127 = vadd.f32 %v967, %v1126
    %v1128 = vpop.f32.mrf.mxu0
    %1129 = vdwg.mxu0
    %v1130 = vlaneseq
    %v1131 = vand.u32 %v1130, 127
    %vm1132 = vcmp.lt.s32.totalorder %v1131, 8
    %v1133 = vsel %vm1132, %v1004, -1e+30
    %v1134 = vsel %vm1132, %v1007, -1e+30
    %v1135 = vsel %vm1132, %v1012, -1e+30
    %v1136 = vsel %vm1132, %v1015, -1e+30
    %v1137 = vsel %vm1132, %v1020, -1e+30
    %v1138 = vsel %vm1132, %v1023, -1e+30
    %v1139 = vsel %vm1132, %v1028, -1e+30
    %v1140 = vsel %vm1132, %v1031, -1e+30
    %v1141 = vsel %vm1132, %v1036, -1e+30
    %v1142 = vsel %vm1132, %v1039, -1e+30
    %v1143 = vsel %vm1132, %v1044, -1e+30
    %v1144 = vsel %vm1132, %v1047, -1e+30
    %v1145 = vsel %vm1132, %v1052, -1e+30
    %v1146 = vsel %vm1132, %v1055, -1e+30
    %v1147 = vsel %vm1132, %v1060, -1e+30
    %v1148 = vsel %vm1132, %v1063, -1e+30
    %v1149 = vsel %vm1132, %v1068, -1e+30
    %v1150 = vsel %vm1132, %v1071, -1e+30
    %v1151 = vsel %vm1132, %v1076, -1e+30
    %v1152 = vsel %vm1132, %v1079, -1e+30
    %v1153 = vsel %vm1132, %v1084, -1e+30
    %v1154 = vsel %vm1132, %v1087, -1e+30
    %v1155 = vsel %vm1132, %v1092, -1e+30
    %v1156 = vsel %vm1132, %v1095, -1e+30
    %v1157 = vsel %vm1132, %v1100, -1e+30
    %v1158 = vsel %vm1132, %v1103, -1e+30
    %v1159 = vsel %vm1132, %v1108, -1e+30
    %v1160 = vsel %vm1132, %v1111, -1e+30
    %v1161 = vsel %vm1132, %v1116, -1e+30
    %v1162 = vsel %vm1132, %v1119, -1e+30
    %v1163 = vsel %vm1132, %v1124, -1e+30
    %v1164 = vsel %vm1132, %v1127, -1e+30
    %1165 = vmax.xlane.f32.xlu0 %v1133
    %v1166 = vpop.xlane.xlu0 %1165
    %1167 = vmax.xlane.f32.xlu0 %v1134
    %v1168 = vpop.xlane.xlu0 %1167
    %1169 = vmax.xlane.f32.xlu0 %v1135
    %v1170 = vpop.xlane.xlu0 %1169
    %1171 = vmax.xlane.f32.xlu0 %v1136
    %v1172 = vpop.xlane.xlu0 %1171
    %1173 = vmax.xlane.f32.xlu0 %v1137
    %v1174 = vpop.xlane.xlu0 %1173
    %1175 = vmax.xlane.f32.xlu0 %v1138
    %v1176 = vpop.xlane.xlu0 %1175
    %1177 = vmax.xlane.f32.xlu0 %v1139
    %v1178 = vpop.xlane.xlu0 %1177
    %1179 = vmax.xlane.f32.xlu0 %v1140
    %v1180 = vpop.xlane.xlu0 %1179
    %1181 = vmax.xlane.f32.xlu0 %v1141
    %v1182 = vpop.xlane.xlu0 %1181
    %1183 = vmax.xlane.f32.xlu0 %v1142
    %v1184 = vpop.xlane.xlu0 %1183
    %1185 = vmax.xlane.f32.xlu0 %v1143
    %v1186 = vpop.xlane.xlu0 %1185
    %1187 = vmax.xlane.f32.xlu0 %v1144
    %v1188 = vpop.xlane.xlu0 %1187
    %1189 = vmax.xlane.f32.xlu0 %v1145
    %v1190 = vpop.xlane.xlu0 %1189
    %1191 = vmax.xlane.f32.xlu0 %v1146
    %v1192 = vpop.xlane.xlu0 %1191
    %1193 = vmax.xlane.f32.xlu0 %v1147
    %v1194 = vpop.xlane.xlu0 %1193
    %1195 = vmax.xlane.f32.xlu0 %v1148
    %v1196 = vpop.xlane.xlu0 %1195
    %1197 = vmax.xlane.f32.xlu0 %v1149
    %v1198 = vpop.xlane.xlu0 %1197
    %1199 = vmax.xlane.f32.xlu0 %v1150
    %v1200 = vpop.xlane.xlu0 %1199
    %1201 = vmax.xlane.f32.xlu0 %v1151
    %v1202 = vpop.xlane.xlu0 %1201
    %1203 = vmax.xlane.f32.xlu0 %v1152
    %v1204 = vpop.xlane.xlu0 %1203
    %1205 = vmax.xlane.f32.xlu0 %v1153
    %v1206 = vpop.xlane.xlu0 %1205
    %1207 = vmax.xlane.f32.xlu0 %v1154
    %v1208 = vpop.xlane.xlu0 %1207
    %1209 = vmax.xlane.f32.xlu0 %v1155
    %v1210 = vpop.xlane.xlu0 %1209
    %1211 = vmax.xlane.f32.xlu0 %v1156
    %v1212 = vpop.xlane.xlu0 %1211
    %1213 = vmax.xlane.f32.xlu0 %v1157
    %v1214 = vpop.xlane.xlu0 %1213
    %1215 = vmax.xlane.f32.xlu0 %v1158
    %v1216 = vpop.xlane.xlu0 %1215
    %1217 = vmax.xlane.f32.xlu0 %v1159
    %v1218 = vpop.xlane.xlu0 %1217
    %1219 = vmax.xlane.f32.xlu0 %v1160
    %v1220 = vpop.xlane.xlu0 %1219
    %1221 = vmax.xlane.f32.xlu0 %v1161
    %v1222 = vpop.xlane.xlu0 %1221
    %1223 = vmax.xlane.f32.xlu0 %v1162
    %v1224 = vpop.xlane.xlu0 %1223
    %1225 = vmax.xlane.f32.xlu0 %v1163
    %v1226 = vpop.xlane.xlu0 %1225
    %1227 = vmax.xlane.f32.xlu0 %v1164
    %v1228 = vpop.xlane.xlu0 %1227
    %v1229 = vsub.f32 %v1133, %v1166
    %v1230 = vsub.f32 %v1134, %v1168
    %v1231 = vsub.f32 %v1135, %v1170
    %v1232 = vsub.f32 %v1136, %v1172
    %v1233 = vsub.f32 %v1137, %v1174
    %v1234 = vsub.f32 %v1138, %v1176
    %v1235 = vsub.f32 %v1139, %v1178
    %v1236 = vsub.f32 %v1140, %v1180
    %v1237 = vsub.f32 %v1141, %v1182
    %v1238 = vsub.f32 %v1142, %v1184
    %v1239 = vsub.f32 %v1143, %v1186
    %v1240 = vsub.f32 %v1144, %v1188
    %v1241 = vsub.f32 %v1145, %v1190
    %v1242 = vsub.f32 %v1146, %v1192
    %v1243 = vsub.f32 %v1147, %v1194
    %v1244 = vsub.f32 %v1148, %v1196
    %v1245 = vsub.f32 %v1149, %v1198
    %v1246 = vsub.f32 %v1150, %v1200
    %v1247 = vsub.f32 %v1151, %v1202
    %v1248 = vsub.f32 %v1152, %v1204
    %v1249 = vsub.f32 %v1153, %v1206
    %v1250 = vsub.f32 %v1154, %v1208
    %v1251 = vsub.f32 %v1155, %v1210
    %v1252 = vsub.f32 %v1156, %v1212
    %v1253 = vsub.f32 %v1157, %v1214
    %v1254 = vsub.f32 %v1158, %v1216
    %v1255 = vsub.f32 %v1159, %v1218
    %v1256 = vsub.f32 %v1160, %v1220
    %v1257 = vsub.f32 %v1161, %v1222
    %v1258 = vsub.f32 %v1162, %v1224
    %v1259 = vsub.f32 %v1163, %v1226
    %v1260 = vsub.f32 %v1164, %v1228
    %v1261 = vmul.f32 %v1229, 1.442695
    %v1262 = vpow.pop %v1261
    %v1263 = vmul.f32 %v1230, 1.442695
    %v1264 = vpow.pop %v1263
    %v1265 = vmul.f32 %v1231, 1.442695
    %v1266 = vpow.pop %v1265
    %v1267 = vmul.f32 %v1232, 1.442695
    %v1268 = vpow.pop %v1267
    %v1269 = vmul.f32 %v1233, 1.442695
    %v1270 = vpow.pop %v1269
    %v1271 = vmul.f32 %v1234, 1.442695
    %v1272 = vpow.pop %v1271
    %v1273 = vmul.f32 %v1235, 1.442695
    %v1274 = vpow.pop %v1273
    %v1275 = vmul.f32 %v1236, 1.442695
    %v1276 = vpow.pop %v1275
    %v1277 = vmul.f32 %v1237, 1.442695
    %v1278 = vpow.pop %v1277
    %v1279 = vmul.f32 %v1238, 1.442695
    %v1280 = vpow.pop %v1279
    %v1281 = vmul.f32 %v1239, 1.442695
    %v1282 = vpow.pop %v1281
    %v1283 = vmul.f32 %v1240, 1.442695
    %v1284 = vpow.pop %v1283
    %v1285 = vmul.f32 %v1241, 1.442695
    %v1286 = vpow.pop %v1285
    %v1287 = vmul.f32 %v1242, 1.442695
    %v1288 = vpow.pop %v1287
    %v1289 = vmul.f32 %v1243, 1.442695
    %v1290 = vpow.pop %v1289
    %v1291 = vmul.f32 %v1244, 1.442695
    %v1292 = vpow.pop %v1291
    %v1293 = vmul.f32 %v1245, 1.442695
    %v1294 = vpow.pop %v1293
    %v1295 = vmul.f32 %v1246, 1.442695
    %v1296 = vpow.pop %v1295
    %v1297 = vmul.f32 %v1247, 1.442695
    %v1298 = vpow.pop %v1297
    %v1299 = vmul.f32 %v1248, 1.442695
    %v1300 = vpow.pop %v1299
    %v1301 = vmul.f32 %v1249, 1.442695
    %v1302 = vpow.pop %v1301
    %v1303 = vmul.f32 %v1250, 1.442695
    %v1304 = vpow.pop %v1303
    %v1305 = vmul.f32 %v1251, 1.442695
    %v1306 = vpow.pop %v1305
    %v1307 = vmul.f32 %v1252, 1.442695
    %v1308 = vpow.pop %v1307
    %v1309 = vmul.f32 %v1253, 1.442695
    %v1310 = vpow.pop %v1309
    %v1311 = vmul.f32 %v1254, 1.442695
    %v1312 = vpow.pop %v1311
    %v1313 = vmul.f32 %v1255, 1.442695
    %v1314 = vpow.pop %v1313
    %v1315 = vmul.f32 %v1256, 1.442695
    %v1316 = vpow.pop %v1315
    %v1317 = vmul.f32 %v1257, 1.442695
    %v1318 = vpow.pop %v1317
    %v1319 = vmul.f32 %v1258, 1.442695
    %v1320 = vpow.pop %v1319
    %v1321 = vmul.f32 %v1259, 1.442695
    %v1322 = vpow.pop %v1321
    %v1323 = vmul.f32 %v1260, 1.442695
    %v1324 = vpow.pop %v1323
    %1325 = vadd.xlane.f32.xlu0 %v1262
    %v1326 = vpop.xlane.xlu0 %1325
    %1327 = vadd.xlane.f32.xlu0 %v1264
    %v1328 = vpop.xlane.xlu0 %1327
    %1329 = vadd.xlane.f32.xlu0 %v1266
    %v1330 = vpop.xlane.xlu0 %1329
    %1331 = vadd.xlane.f32.xlu0 %v1268
    %v1332 = vpop.xlane.xlu0 %1331
    %1333 = vadd.xlane.f32.xlu0 %v1270
    %v1334 = vpop.xlane.xlu0 %1333
    %1335 = vadd.xlane.f32.xlu0 %v1272
    %v1336 = vpop.xlane.xlu0 %1335
    %1337 = vadd.xlane.f32.xlu0 %v1274
    %v1338 = vpop.xlane.xlu0 %1337
    %1339 = vadd.xlane.f32.xlu0 %v1276
    %v1340 = vpop.xlane.xlu0 %1339
    %1341 = vadd.xlane.f32.xlu0 %v1278
    %v1342 = vpop.xlane.xlu0 %1341
    %1343 = vadd.xlane.f32.xlu0 %v1280
    %v1344 = vpop.xlane.xlu0 %1343
    %1345 = vadd.xlane.f32.xlu0 %v1282
    %v1346 = vpop.xlane.xlu0 %1345
    %1347 = vadd.xlane.f32.xlu0 %v1284
    %v1348 = vpop.xlane.xlu0 %1347
    %1349 = vadd.xlane.f32.xlu0 %v1286
    %v1350 = vpop.xlane.xlu0 %1349
    %1351 = vadd.xlane.f32.xlu0 %v1288
    %v1352 = vpop.xlane.xlu0 %1351
    %1353 = vadd.xlane.f32.xlu0 %v1290
    %v1354 = vpop.xlane.xlu0 %1353
    %1355 = vadd.xlane.f32.xlu0 %v1292
    %v1356 = vpop.xlane.xlu0 %1355
    %1357 = vadd.xlane.f32.xlu0 %v1294
    %v1358 = vpop.xlane.xlu0 %1357
    %1359 = vadd.xlane.f32.xlu0 %v1296
    %v1360 = vpop.xlane.xlu0 %1359
    %1361 = vadd.xlane.f32.xlu0 %v1298
    %v1362 = vpop.xlane.xlu0 %1361
    %1363 = vadd.xlane.f32.xlu0 %v1300
    %v1364 = vpop.xlane.xlu0 %1363
    %1365 = vadd.xlane.f32.xlu0 %v1302
    %v1366 = vpop.xlane.xlu0 %1365
    %1367 = vadd.xlane.f32.xlu0 %v1304
    %v1368 = vpop.xlane.xlu0 %1367
    %1369 = vadd.xlane.f32.xlu0 %v1306
    %v1370 = vpop.xlane.xlu0 %1369
    %1371 = vadd.xlane.f32.xlu0 %v1308
    %v1372 = vpop.xlane.xlu0 %1371
    %1373 = vadd.xlane.f32.xlu0 %v1310
    %v1374 = vpop.xlane.xlu0 %1373
    %1375 = vadd.xlane.f32.xlu0 %v1312
    %v1376 = vpop.xlane.xlu0 %1375
    %1377 = vadd.xlane.f32.xlu0 %v1314
    %v1378 = vpop.xlane.xlu0 %1377
    %1379 = vadd.xlane.f32.xlu0 %v1316
    %v1380 = vpop.xlane.xlu0 %1379
    %1381 = vadd.xlane.f32.xlu0 %v1318
    %v1382 = vpop.xlane.xlu0 %1381
    %1383 = vadd.xlane.f32.xlu0 %v1320
    %v1384 = vpop.xlane.xlu0 %1383
    %1385 = vadd.xlane.f32.xlu0 %v1322
    %v1386 = vpop.xlane.xlu0 %1385
    %1387 = vadd.xlane.f32.xlu0 %v1324
    %v1388 = vpop.xlane.xlu0 %1387
    %v1389 = vlog2.pop %v1326
    %v1390 = vmul.f32 %v1389, 0.6931472
    %v1391 = vlog2.pop %v1328
    %v1392 = vmul.f32 %v1391, 0.6931472
    %v1393 = vlog2.pop %v1330
    %v1394 = vmul.f32 %v1393, 0.6931472
    %v1395 = vlog2.pop %v1332
    %v1396 = vmul.f32 %v1395, 0.6931472
    %v1397 = vlog2.pop %v1334
    %v1398 = vmul.f32 %v1397, 0.6931472
    %v1399 = vlog2.pop %v1336
    %v1400 = vmul.f32 %v1399, 0.6931472
    %v1401 = vlog2.pop %v1338
    %v1402 = vmul.f32 %v1401, 0.6931472
    %v1403 = vlog2.pop %v1340
    %v1404 = vmul.f32 %v1403, 0.6931472
    %v1405 = vlog2.pop %v1342
    %v1406 = vmul.f32 %v1405, 0.6931472
    %v1407 = vlog2.pop %v1344
    %v1408 = vmul.f32 %v1407, 0.6931472
    %v1409 = vlog2.pop %v1346
    %v1410 = vmul.f32 %v1409, 0.6931472
    %v1411 = vlog2.pop %v1348
    %v1412 = vmul.f32 %v1411, 0.6931472
    %v1413 = vlog2.pop %v1350
    %v1414 = vmul.f32 %v1413, 0.6931472
    %v1415 = vlog2.pop %v1352
    %v1416 = vmul.f32 %v1415, 0.6931472
    %v1417 = vlog2.pop %v1354
    %v1418 = vmul.f32 %v1417, 0.6931472
    %v1419 = vlog2.pop %v1356
    %v1420 = vmul.f32 %v1419, 0.6931472
    %v1421 = vlog2.pop %v1358
    %v1422 = vmul.f32 %v1421, 0.6931472
    %v1423 = vlog2.pop %v1360
    %v1424 = vmul.f32 %v1423, 0.6931472
    %v1425 = vlog2.pop %v1362
    %v1426 = vmul.f32 %v1425, 0.6931472
    %v1427 = vlog2.pop %v1364
    %v1428 = vmul.f32 %v1427, 0.6931472
    %v1429 = vlog2.pop %v1366
    %v1430 = vmul.f32 %v1429, 0.6931472
    %v1431 = vlog2.pop %v1368
    %v1432 = vmul.f32 %v1431, 0.6931472
    %v1433 = vlog2.pop %v1370
    %v1434 = vmul.f32 %v1433, 0.6931472
    %v1435 = vlog2.pop %v1372
    %v1436 = vmul.f32 %v1435, 0.6931472
    %v1437 = vlog2.pop %v1374
    %v1438 = vmul.f32 %v1437, 0.6931472
    %v1439 = vlog2.pop %v1376
    %v1440 = vmul.f32 %v1439, 0.6931472
    %v1441 = vlog2.pop %v1378
    %v1442 = vmul.f32 %v1441, 0.6931472
    %v1443 = vlog2.pop %v1380
    %v1444 = vmul.f32 %v1443, 0.6931472
    %v1445 = vlog2.pop %v1382
    %v1446 = vmul.f32 %v1445, 0.6931472
    %v1447 = vlog2.pop %v1384
    %v1448 = vmul.f32 %v1447, 0.6931472
    %v1449 = vlog2.pop %v1386
    %v1450 = vmul.f32 %v1449, 0.6931472
    %v1451 = vlog2.pop %v1388
    %v1452 = vmul.f32 %v1451, 0.6931472
    %v1453 = vsub.f32 %v1229, %v1390
    %v1454 = vsub.f32 %v1230, %v1392
    %v1455 = vsub.f32 %v1231, %v1394
    %v1456 = vsub.f32 %v1232, %v1396
    %v1457 = vsub.f32 %v1233, %v1398
    %v1458 = vsub.f32 %v1234, %v1400
    %v1459 = vsub.f32 %v1235, %v1402
    %v1460 = vsub.f32 %v1236, %v1404
    %v1461 = vsub.f32 %v1237, %v1406
    %v1462 = vsub.f32 %v1238, %v1408
    %v1463 = vsub.f32 %v1239, %v1410
    %v1464 = vsub.f32 %v1240, %v1412
    %v1465 = vsub.f32 %v1241, %v1414
    %v1466 = vsub.f32 %v1242, %v1416
    %v1467 = vsub.f32 %v1243, %v1418
    %v1468 = vsub.f32 %v1244, %v1420
    %v1469 = vsub.f32 %v1245, %v1422
    %v1470 = vsub.f32 %v1246, %v1424
    %v1471 = vsub.f32 %v1247, %v1426
    %v1472 = vsub.f32 %v1248, %v1428
    %v1473 = vsub.f32 %v1249, %v1430
    %v1474 = vsub.f32 %v1250, %v1432
    %v1475 = vsub.f32 %v1251, %v1434
    %v1476 = vsub.f32 %v1252, %v1436
    %v1477 = vsub.f32 %v1253, %v1438
    %v1478 = vsub.f32 %v1254, %v1440
    %v1479 = vsub.f32 %v1255, %v1442
    %v1480 = vsub.f32 %v1256, %v1444
    %v1481 = vsub.f32 %v1257, %v1446
    %v1482 = vsub.f32 %v1258, %v1448
    %v1483 = vsub.f32 %v1259, %v1450
    %v1484 = vsub.f32 %v1260, %v1452
    %1485 = vst [vmem:[#allocation5] sm:$0xff] %v1453
    %1486 = vst [vmem:[#allocation5 + $0x8] sm:$0xff] %v1454
    %1487 = vst [vmem:[#allocation5 + $0x10] sm:$0xff] %v1455
    %1488 = vst [vmem:[#allocation5 + $0x18] sm:$0xff] %v1456
    %1489 = vst [vmem:[#allocation5 + $0x20] sm:$0xff] %v1457
    %1490 = vst [vmem:[#allocation5 + $0x28] sm:$0xff] %v1458
    %1491 = vst [vmem:[#allocation5 + $0x30] sm:$0xff] %v1459
    %1492 = vst [vmem:[#allocation5 + $0x38] sm:$0xff] %v1460
    %1493 = vst [vmem:[#allocation5 + $0x40] sm:$0xff] %v1461
    %1494 = vst [vmem:[#allocation5 + $0x48] sm:$0xff] %v1462
    %1495 = vst [vmem:[#allocation5 + $0x50] sm:$0xff] %v1463
    %1496 = vst [vmem:[#allocation5 + $0x58] sm:$0xff] %v1464
    %1497 = vst [vmem:[#allocation5 + $0x60] sm:$0xff] %v1465
    %1498 = vst [vmem:[#allocation5 + $0x68] sm:$0xff] %v1466
    %1499 = vst [vmem:[#allocation5 + $0x70] sm:$0xff] %v1467
    %1500 = vst [vmem:[#allocation5 + $0x78] sm:$0xff] %v1468
    %1501 = vst [vmem:[#allocation5 + $0x80] sm:$0xff] %v1469
    %1502 = vst [vmem:[#allocation5 + $0x88] sm:$0xff] %v1470
    %1503 = vst [vmem:[#allocation5 + $0x90] sm:$0xff] %v1471
    %1504 = vst [vmem:[#allocation5 + $0x98] sm:$0xff] %v1472
    %1505 = vst [vmem:[#allocation5 + $0xa0] sm:$0xff] %v1473
    %1506 = vst [vmem:[#allocation5 + $0xa8] sm:$0xff] %v1474
    %1507 = vst [vmem:[#allocation5 + $0xb0] sm:$0xff] %v1475
    %1508 = vst [vmem:[#allocation5 + $0xb8] sm:$0xff] %v1476
    %1509 = vst [vmem:[#allocation5 + $0xc0] sm:$0xff] %v1477
    %1510 = vst [vmem:[#allocation5 + $0xc8] sm:$0xff] %v1478
    %1511 = vst [vmem:[#allocation5 + $0xd0] sm:$0xff] %v1479
    %1512 = vst [vmem:[#allocation5 + $0xd8] sm:$0xff] %v1480
    %1513 = vst [vmem:[#allocation5 + $0xe0] sm:$0xff] %v1481
    %1514 = vst [vmem:[#allocation5 + $0xe8] sm:$0xff] %v1482
    %1515 = vst [vmem:[#allocation5 + $0xf0] sm:$0xff] %v1483
    %1516 = vst [vmem:[#allocation5 + $0xf8] sm:$0xff] %v1484
    // Predicated region
    $region30: #{tpu_custom_call.1} parent=1 // pred_check
      _
    $region31: #{tpu_custom_call.1} parent=1 // pred_check_branch
      %1518 = sbr.rel (0) target = $region33
    $region32: #{tpu_custom_call.1} parent=1 // pred_region
      %s1520 = ssub.s32 4096, 4096
      %1521 = vsyncadd [#allocation4], %s1520
      %s1522 = sshll.u32 [#allocation5], 4
      %s1523 = int_to_ptr.vmem [resolvable:$true] %s1522
      %1528 = dma.vmem_to_hbm [thread:$0]  %s1523, 4096, %s6, [#allocation4], 128, 128, 8
    $region33: #{tpu_custom_call.1} parent=1 // pred_fallthru
      _
    // Predicated region
    $region34: #{tpu_custom_call.1} parent=1 // pred_check
      _
    $region35: #{tpu_custom_call.1} parent=1 // pred_check_branch
      %1530 = sbr.rel (0) target = $region37
    $region36: #{tpu_custom_call.1} parent=1 // pred_region
      %1531 = dma.done [#allocation4], 4096
    $region37: #{tpu_custom_call.1} parent=1 // pred_fallthru
      _
    %1532 = vsyncpa [#allocation3], 1
    %1533 = vsyncpa [#allocation4], 1

</llo_original>
